<compile_context>
chip_gen: v5e
topology: v5e:2x2
jax: 0.10.0
libtpu: 0.0.40
codegen_flags: <defaults>
</compile_context>

<pallas_src>
import jax
import jax.numpy as jnp
from jax.experimental import pallas as pl
from jax.experimental.pallas import tpu as pltpu

SIZE_EMBEDDING = 16   # `size_embedding` in the reference module
D_PAD = 128           # lane-dense padded feature width
N_LAYERS = 3

_VMEM = pl.BlockSpec(memory_space=pltpu.MemorySpace.VMEM)


def _round_up(x, m):
    return ((x + m - 1) // m) * m


# ----------------------------------------------------------------------------
# Fused 3-layer SAGE forward kernel (single invocation, everything in VMEM).
# ----------------------------------------------------------------------------
def _sage_fused_kernel(h_ref, ef_ref, gather_ref, adj_ref, invdeg_ref,
                       wmn_ref, wme_ref, bm_ref, wapp_ref, ba_ref,
                       out_ref, cat_ref):
    h = h_ref[...]             # (Np, 128) bf16 node feats, lanes >= ndim_in are 0
    ef = ef_ref[...]           # (Ep, 128) bf16 edge feats, lanes >= edim are 0
    gth = gather_ref[...]      # (Ep, Np)  bf16 one-hot src gather matrix
    adj = adj_ref[...]         # (Np, Ep)  bf16 one-hot dst matrix (0/1, exact)
    # exact f32 mean normalisation, broadcast hoisted out of the layer loop
    inv_b = jnp.broadcast_to(invdeg_ref[...], (adj.shape[0], D_PAD))

    h_f32 = h.astype(jnp.float32)
    for layer in range(N_LAYERS):        # unrolled; weights stay in VMEM
        # --- message: m_e = W_msg(cat([h[src_e], efeat_e])) ---------------
        # Reassociated node path: project first (N-scale), gather second.
        hw = jnp.dot(h, wmn_ref[layer],
                     preferred_element_type=jnp.float32)          # (Np, 128)
        msg = (jnp.dot(gth, hw.astype(jnp.bfloat16),
                       preferred_element_type=jnp.float32)        # (Ep, 128)
               + jnp.dot(ef, wme_ref[layer],
                         preferred_element_type=jnp.float32)
               + bm_ref[layer])
        # --- aggregate: mean of incoming messages per destination ---------
        h_neigh = jnp.dot(adj, msg.astype(jnp.bfloat16),
                          preferred_element_type=jnp.float32) * inv_b
        # --- apply: relu(W_apply(cat([h, h_neigh]))) as ONE K=256 matmul ---
        cat_ref[:, :D_PAD] = h
        cat_ref[:, D_PAD:] = h_neigh.astype(jnp.bfloat16)
        h_f32 = jnp.maximum(
            jnp.dot(cat_ref[...], wapp_ref[layer],
                    preferred_element_type=jnp.float32) + ba_ref[layer],
            0.0)
        h = h_f32.astype(jnp.bfloat16)
        # TODO(synk): nn.Dropout between layers is eval-mode identity here;
        # training-mode random masking is not reproduced.

    out_ref[...] = h_f32


def sage_forward(h0, ef, gather, adj, inv_deg, packed):
    """Single fused pallas_call for the whole 3-layer forward pass."""
    wmn, wme, bm, wapp, ba = packed
    n_pad = h0.shape[0]
    e_pad = ef.shape[0]

    flops_layer = (2 * n_pad * D_PAD * D_PAD          # node projection (reassoc.)
                   + 2 * e_pad * n_pad * D_PAD        # one-hot src gather
                   + 2 * e_pad * D_PAD * D_PAD        # edge projection
                   + 2 * n_pad * e_pad * D_PAD        # mean aggregation
                   + 2 * n_pad * (2 * D_PAD) * D_PAD)  # fused K=256 apply
    operands = (h0, ef, gather, adj, inv_deg, wmn, wme, bm, wapp, ba)
    operand_bytes = sum(int(x.size) * x.dtype.itemsize for x in operands)
    out_bytes = n_pad * D_PAD * 4
    scratch_bytes = n_pad * 2 * D_PAD * 2
    resident = operand_bytes + out_bytes + scratch_bytes

    # Whole-graph-in-VMEM ceiling: dominated by the two N_pad*E_pad bf16
    # one-hot buffers.  v7x has only 64 MiB physical VMEM (vs 128 MiB on
    # v5e/v6e); cap below that and size explicitly so scaling fails loudly.
    vmem_limit = min(max(2 * resident + (4 << 20), 16 << 20), 60 << 20)

    return pl.pallas_call(
        _sage_fused_kernel,
        out_shape=jax.ShapeDtypeStruct((n_pad, D_PAD), jnp.float32),
        in_specs=[_VMEM] * len(operands),
        out_specs=_VMEM,
        scratch_shapes=[pltpu.VMEM((n_pad, 2 * D_PAD), jnp.bfloat16)],
        compiler_params=pltpu.CompilerParams(vmem_limit_bytes=vmem_limit),
        cost_estimate=pl.CostEstimate(flops=N_LAYERS * flops_layer,
                                      transcendentals=0,
                                      bytes_accessed=operand_bytes + out_bytes),
    )(*operands)


# ----------------------------------------------------------------------------
# Parameter init (PyTorch nn.Linear default) + lane-dense bf16 packing.
# ----------------------------------------------------------------------------
def init_linear(key, fan_in, fan_out):
    kw, kb = jax.random.split(key)
    bound = 1.0 / (fan_in ** 0.5)
    w = jax.random.uniform(kw, (fan_in, fan_out), jnp.float32, -bound, bound)
    b = jax.random.uniform(kb, (fan_out,), jnp.float32, -bound, bound)
    return w, b


def init_sage_params(key, ndim_in, edim, ndim_out):
    dims = [(ndim_in, SIZE_EMBEDDING),
            (SIZE_EMBEDDING, SIZE_EMBEDDING),
            (SIZE_EMBEDDING, ndim_out)]
    keys = jax.random.split(key, 2 * len(dims))
    layers = []
    for li, (din, dout) in enumerate(dims):
        w_msg, b_msg = init_linear(keys[2 * li], din + edim, dout)
        w_app, b_app = init_linear(keys[2 * li + 1], din + dout, dout)
        layers.append(dict(din=din, dout=dout, edim=edim,
                           w_msg=w_msg, b_msg=b_msg,
                           w_app=w_app, b_app=b_app))
    return layers


def pack_params(layers):
    """Split concat-weights, zero-pad to 128-lane slabs, bf16 for the MXU.

    W_apply is packed as a single (256, 128) slab per layer so the apply step
    is one K=256 matmul: rows [0,128) act on h (self part), rows [128,256)
    act on h_neigh.
    """
    n_l = len(layers)
    wmn = jnp.zeros((n_l, D_PAD, D_PAD), jnp.float32)
    wme = jnp.zeros((n_l, D_PAD, D_PAD), jnp.float32)
    bm = jnp.zeros((n_l, 1, D_PAD), jnp.float32)
    wapp = jnp.zeros((n_l, 2 * D_PAD, D_PAD), jnp.float32)
    ba = jnp.zeros((n_l, 1, D_PAD), jnp.float32)
    for i, p in enumerate(layers):
        din, dout, edim = p["din"], p["dout"], p["edim"]
        # W_msg acts on cat([h_src, efeat]): first din rows -> node part,
        # next edim rows -> edge part.
        wmn = wmn.at[i, :din, :dout].set(p["w_msg"][:din])
        wme = wme.at[i, :edim, :dout].set(p["w_msg"][din:])
        bm = bm.at[i, 0, :dout].set(p["b_msg"])
        # W_apply acts on cat([h, h_neigh]): first din rows self, next dout neigh.
        wapp = wapp.at[i, :din, :dout].set(p["w_app"][:din])
        wapp = wapp.at[i, D_PAD:D_PAD + dout, :dout].set(p["w_app"][din:])
        ba = ba.at[i, 0, :dout].set(p["b_app"])
    return (wmn.astype(jnp.bfloat16), wme.astype(jnp.bfloat16), bm,
            wapp.astype(jnp.bfloat16), ba)


# ----------------------------------------------------------------------------
# Graph / feature preparation (glue; constant across layers).
# ----------------------------------------------------------------------------
def prepare_graph(src, dst, n_nodes):
    e = src.shape[0]
    # 128-multiple padding: these dims land on lane/contraction axes of the
    # one-hot matmuls, so lane-dense layouts need multiples of 128.
    n_pad = _round_up(max(n_nodes, 128), 128)
    e_pad = _round_up(max(e, 128), 128)
    src_p = jnp.full((e_pad,), -1, jnp.int32).at[:e].set(src.astype(jnp.int32))
    dst_p = jnp.full((e_pad,), -1, jnp.int32).at[:e].set(dst.astype(jnp.int32))
    node_ids = jnp.arange(n_pad, dtype=jnp.int32)
    # 0/1 values are exact in bf16.
    gather = (src_p[:, None] == node_ids[None, :]).astype(jnp.bfloat16)   # (Ep, Np)
    adj = (dst_p[None, :] == node_ids[:, None]).astype(jnp.bfloat16)      # (Np, Ep)
    deg = adj.astype(jnp.float32).sum(axis=1, keepdims=True)
    inv_deg = jnp.where(deg > 0, 1.0 / deg, 0.0)   # (Np, 1) f32, exact mean scale
    return gather, adj, inv_deg, n_pad, e_pad


def pad_features(x, rows_pad):
    r, d = x.shape
    return (jnp.zeros((rows_pad, D_PAD), jnp.float32)
            .at[:r, :d].set(x).astype(jnp.bfloat16))


# ----------------------------------------------------------------------------
# Pure-JAX f32 reference (mirrors the PyTorch module) for a correctness check.
# ----------------------------------------------------------------------------
def sage_reference(layers, src, dst, n, nfeats, efeats):
    node_ids = jnp.arange(n)
    adj = (dst[None, :] == node_ids[:, None]).astype(jnp.float32)
    deg = adj.sum(axis=1, keepdims=True)
    inv_deg = jnp.where(deg > 0, 1.0 / deg, 0.0)
    h = nfeats
    for p in layers:
        h_src = jnp.take(h, src, axis=0)
        msg = jnp.concatenate([h_src, efeats], axis=1) @ p["w_msg"] + p["b_msg"]
        h_neigh = (adj @ msg) * inv_deg
        h = jax.nn.relu(jnp.concatenate([h, h_neigh], axis=1) @ p["w_app"]
                        + p["b_app"])
    return h


# ----------------------------------------------------------------------------
if __name__ == "__main__":
    key = jax.random.PRNGKey(0)
    N, E = 8, 16                       # nodes, edges
    ndim_in, edim, ndim_out = 8, 8, 8

    k_src, k_dst, k_nf, k_ef, k_p = jax.random.split(key, 5)
    src = jax.random.randint(k_src, (E,), 0, N)
    dst = jax.random.randint(k_dst, (E,), 0, N)
    # Reference module carries [rows, 1, feat]; squeeze the singleton dim
    # (its final `nfeats.sum(1)` is exactly this squeeze).
    nfeats = jax.random.normal(k_nf, (N, 1, ndim_in), jnp.float32)[:, 0, :]
    efeats = jax.random.normal(k_ef, (E, 1, edim), jnp.float32)[:, 0, :]

    layers = init_sage_params(k_p, ndim_in, edim, ndim_out)
    packed = pack_params(layers)

    gather, adj, inv_deg, n_pad, e_pad = prepare_graph(src, dst, N)
    h0 = pad_features(nfeats, n_pad)
    ef = pad_features(efeats, e_pad)

    out_pad = sage_forward(h0, ef, gather, adj, inv_deg, packed)   # (Np, 128)
    out = out_pad[:N, :ndim_out]
    jax.block_until_ready(out)

    ref = sage_reference(layers, src, dst, N, nfeats, efeats)
    assert out.shape == (N, ndim_out)
    # bf16-operand tolerance (f32 MXU accumulation; ~0.4% per bf16 rounding,
    # a handful of roundings per layer across 3 layers).
    assert bool(jnp.allclose(out, ref, rtol=3e-2, atol=3e-2)), \
        "fused kernel mismatch vs. pure-JAX reference"
    print("KERNEL_OK")
</pallas_src>

<mosaic_0001>
module attributes {stable_mosaic.version = 11 : i64} {
  func.func @_sage_fused_kernel(%arg0: memref<128x128xbf16, #tpu.memory_space<vmem>>, %arg1: memref<128x128xbf16, #tpu.memory_space<vmem>>, %arg2: memref<128x128xbf16, #tpu.memory_space<vmem>>, %arg3: memref<128x128xbf16, #tpu.memory_space<vmem>>, %arg4: memref<128x1xf32, #tpu.memory_space<vmem>>, %arg5: memref<3x128x128xbf16, #tpu.memory_space<vmem>>, %arg6: memref<3x128x128xbf16, #tpu.memory_space<vmem>>, %arg7: memref<3x1x128xf32, #tpu.memory_space<vmem>>, %arg8: memref<3x256x128xbf16, #tpu.memory_space<vmem>>, %arg9: memref<3x1x128xf32, #tpu.memory_space<vmem>>, %arg10: memref<128x128xf32, #tpu.memory_space<vmem>>, %arg11: memref<128x256xbf16, #tpu.memory_space<vmem>>) attributes {dimension_semantics = [], scalar_prefetch = 0 : i64, scratch_operands = 1 : i64, tpu.core_type = #tpu.core_type<tc>} {
    %c0 = arith.constant 0 : index
    %c0_0 = arith.constant 0 : index
    %0 = vector.load %arg0[%c0, %c0_0] : memref<128x128xbf16, #tpu.memory_space<vmem>>, vector<128x128xbf16>
    %c0_1 = arith.constant 0 : index
    %c0_2 = arith.constant 0 : index
    %1 = vector.load %arg1[%c0_1, %c0_2] : memref<128x128xbf16, #tpu.memory_space<vmem>>, vector<128x128xbf16>
    %c0_3 = arith.constant 0 : index
    %c0_4 = arith.constant 0 : index
    %2 = vector.load %arg2[%c0_3, %c0_4] : memref<128x128xbf16, #tpu.memory_space<vmem>>, vector<128x128xbf16>
    %c0_5 = arith.constant 0 : index
    %c0_6 = arith.constant 0 : index
    %3 = vector.load %arg3[%c0_5, %c0_6] : memref<128x128xbf16, #tpu.memory_space<vmem>>, vector<128x128xbf16>
    %c0_7 = arith.constant 0 : index
    %c0_8 = arith.constant 0 : index
    %4 = vector.load %arg4[%c0_7, %c0_8] : memref<128x1xf32, #tpu.memory_space<vmem>>, vector<128x1xf32>
    %5 = vector.shape_cast %4 : vector<128x1xf32> to vector<128x1xf32>
    %6 = vector.broadcast %5 : vector<128x1xf32> to vector<128x128xf32>
    %c0_9 = arith.constant 0 : index
    %c0_10 = arith.constant 0 : index
    %c0_11 = arith.constant 0 : index
    %7 = vector.load %arg5[%c0_9, %c0_10, %c0_11] : memref<3x128x128xbf16, #tpu.memory_space<vmem>>, vector<1x128x128xbf16>
    %8 = vector.shape_cast %7 : vector<1x128x128xbf16> to vector<128x128xbf16>
    %cst = arith.constant dense<0.000000e+00> : vector<128x128xf32>
    %9 = tpu.matmul %0, %8, %cst {dimension_numbers = #tpu.dot_dimension_numbers<[1], [0], [0], [1], [0, 0, 1, 1], [], []>} : vector<128x128xbf16>, vector<128x128xbf16>, vector<128x128xf32> -> vector<128x128xf32>
    %10 = arith.truncf %9 : vector<128x128xf32> to vector<128x128xbf16>
    %cst_12 = arith.constant dense<0.000000e+00> : vector<128x128xf32>
    %11 = tpu.matmul %2, %10, %cst_12 {dimension_numbers = #tpu.dot_dimension_numbers<[1], [0], [0], [1], [0, 0, 1, 1], [], []>} : vector<128x128xbf16>, vector<128x128xbf16>, vector<128x128xf32> -> vector<128x128xf32>
    %c0_13 = arith.constant 0 : index
    %c0_14 = arith.constant 0 : index
    %c0_15 = arith.constant 0 : index
    %12 = vector.load %arg6[%c0_13, %c0_14, %c0_15] : memref<3x128x128xbf16, #tpu.memory_space<vmem>>, vector<1x128x128xbf16>
    %13 = vector.shape_cast %12 : vector<1x128x128xbf16> to vector<128x128xbf16>
    %cst_16 = arith.constant dense<0.000000e+00> : vector<128x128xf32>
    %14 = tpu.matmul %1, %13, %cst_16 {dimension_numbers = #tpu.dot_dimension_numbers<[1], [0], [0], [1], [0, 0, 1, 1], [], []>} : vector<128x128xbf16>, vector<128x128xbf16>, vector<128x128xf32> -> vector<128x128xf32>
    %15 = arith.addf %11, %14 : vector<128x128xf32>
    %c0_17 = arith.constant 0 : index
    %c0_18 = arith.constant 0 : index
    %c0_19 = arith.constant 0 : index
    %16 = vector.load %arg7[%c0_17, %c0_18, %c0_19] : memref<3x1x128xf32, #tpu.memory_space<vmem>>, vector<1x1x128xf32>
    %17 = vector.shape_cast %16 : vector<1x1x128xf32> to vector<1x128xf32>
    %18 = vector.broadcast %17 : vector<1x128xf32> to vector<128x128xf32>
    %19 = arith.addf %15, %18 : vector<128x128xf32>
    %20 = arith.truncf %19 : vector<128x128xf32> to vector<128x128xbf16>
    %cst_20 = arith.constant dense<0.000000e+00> : vector<128x128xf32>
    %21 = tpu.matmul %3, %20, %cst_20 {dimension_numbers = #tpu.dot_dimension_numbers<[1], [0], [0], [1], [0, 0, 1, 1], [], []>} : vector<128x128xbf16>, vector<128x128xbf16>, vector<128x128xf32> -> vector<128x128xf32>
    %22 = arith.mulf %21, %6 : vector<128x128xf32>
    %c0_21 = arith.constant 0 : index
    %c0_22 = arith.constant 0 : index
    %23 = vector.load %arg11[%c0_21, %c0_22] : memref<128x256xbf16, #tpu.memory_space<vmem>>, vector<128x128xbf16>
    tpu.vector_store %arg11[%c0_21, %c0_22], %0 {strides = array<i32>} : memref<128x256xbf16, #tpu.memory_space<vmem>>, vector<128x128xbf16>,
    %24 = arith.truncf %22 : vector<128x128xf32> to vector<128x128xbf16>
    %c0_23 = arith.constant 0 : index
    %c128 = arith.constant 128 : index
    %25 = vector.load %arg11[%c0_23, %c128] : memref<128x256xbf16, #tpu.memory_space<vmem>>, vector<128x128xbf16>
    tpu.vector_store %arg11[%c0_23, %c128], %24 {strides = array<i32>} : memref<128x256xbf16, #tpu.memory_space<vmem>>, vector<128x128xbf16>,
    %c0_24 = arith.constant 0 : index
    %c0_25 = arith.constant 0 : index
    %26 = vector.load %arg11[%c0_24, %c0_25] : memref<128x256xbf16, #tpu.memory_space<vmem>>, vector<128x256xbf16>
    %c0_26 = arith.constant 0 : index
    %c0_27 = arith.constant 0 : index
    %c0_28 = arith.constant 0 : index
    %27 = vector.load %arg8[%c0_26, %c0_27, %c0_28] : memref<3x256x128xbf16, #tpu.memory_space<vmem>>, vector<1x256x128xbf16>
    %28 = vector.shape_cast %27 : vector<1x256x128xbf16> to vector<256x128xbf16>
    %cst_29 = arith.constant dense<0.000000e+00> : vector<128x128xf32>
    %29 = tpu.matmul %26, %28, %cst_29 {dimension_numbers = #tpu.dot_dimension_numbers<[1], [0], [0], [1], [0, 0, 1, 1], [], []>} : vector<128x256xbf16>, vector<256x128xbf16>, vector<128x128xf32> -> vector<128x128xf32>
    %c0_30 = arith.constant 0 : index
    %c0_31 = arith.constant 0 : index
    %c0_32 = arith.constant 0 : index
    %30 = vector.load %arg9[%c0_30, %c0_31, %c0_32] : memref<3x1x128xf32, #tpu.memory_space<vmem>>, vector<1x1x128xf32>
    %31 = vector.shape_cast %30 : vector<1x1x128xf32> to vector<1x128xf32>
    %32 = vector.broadcast %31 : vector<1x128xf32> to vector<128x128xf32>
    %33 = arith.addf %29, %32 : vector<128x128xf32>
    %cst_33 = arith.constant 0.000000e+00 : f32
    %34 = vector.broadcast %cst_33 : f32 to vector<128x128xf32>
    %35 = arith.maximumf %33, %34 : vector<128x128xf32>
    %36 = arith.truncf %35 : vector<128x128xf32> to vector<128x128xbf16>
    %c1 = arith.constant 1 : index
    %c0_34 = arith.constant 0 : index
    %c0_35 = arith.constant 0 : index
    %37 = vector.load %arg5[%c1, %c0_34, %c0_35] : memref<3x128x128xbf16, #tpu.memory_space<vmem>>, vector<1x128x128xbf16>
    %38 = vector.shape_cast %37 : vector<1x128x128xbf16> to vector<128x128xbf16>
    %cst_36 = arith.constant dense<0.000000e+00> : vector<128x128xf32>
    %39 = tpu.matmul %36, %38, %cst_36 {dimension_numbers = #tpu.dot_dimension_numbers<[1], [0], [0], [1], [0, 0, 1, 1], [], []>} : vector<128x128xbf16>, vector<128x128xbf16>, vector<128x128xf32> -> vector<128x128xf32>
    %40 = arith.truncf %39 : vector<128x128xf32> to vector<128x128xbf16>
    %cst_37 = arith.constant dense<0.000000e+00> : vector<128x128xf32>
    %41 = tpu.matmul %2, %40, %cst_37 {dimension_numbers = #tpu.dot_dimension_numbers<[1], [0], [0], [1], [0, 0, 1, 1], [], []>} : vector<128x128xbf16>, vector<128x128xbf16>, vector<128x128xf32> -> vector<128x128xf32>
    %c1_38 = arith.constant 1 : index
    %c0_39 = arith.constant 0 : index
    %c0_40 = arith.constant 0 : index
    %42 = vector.load %arg6[%c1_38, %c0_39, %c0_40] : memref<3x128x128xbf16, #tpu.memory_space<vmem>>, vector<1x128x128xbf16>
    %43 = vector.shape_cast %42 : vector<1x128x128xbf16> to vector<128x128xbf16>
    %cst_41 = arith.constant dense<0.000000e+00> : vector<128x128xf32>
    %44 = tpu.matmul %1, %43, %cst_41 {dimension_numbers = #tpu.dot_dimension_numbers<[1], [0], [0], [1], [0, 0, 1, 1], [], []>} : vector<128x128xbf16>, vector<128x128xbf16>, vector<128x128xf32> -> vector<128x128xf32>
    %45 = arith.addf %41, %44 : vector<128x128xf32>
    %c1_42 = arith.constant 1 : index
    %c0_43 = arith.constant 0 : index
    %c0_44 = arith.constant 0 : index
    %46 = vector.load %arg7[%c1_42, %c0_43, %c0_44] : memref<3x1x128xf32, #tpu.memory_space<vmem>>, vector<1x1x128xf32>
    %47 = vector.shape_cast %46 : vector<1x1x128xf32> to vector<1x128xf32>
    %48 = vector.broadcast %47 : vector<1x128xf32> to vector<128x128xf32>
    %49 = arith.addf %45, %48 : vector<128x128xf32>
    %50 = arith.truncf %49 : vector<128x128xf32> to vector<128x128xbf16>
    %cst_45 = arith.constant dense<0.000000e+00> : vector<128x128xf32>
    %51 = tpu.matmul %3, %50, %cst_45 {dimension_numbers = #tpu.dot_dimension_numbers<[1], [0], [0], [1], [0, 0, 1, 1], [], []>} : vector<128x128xbf16>, vector<128x128xbf16>, vector<128x128xf32> -> vector<128x128xf32>
    %52 = arith.mulf %51, %6 : vector<128x128xf32>
    %c0_46 = arith.constant 0 : index
    %c0_47 = arith.constant 0 : index
    %53 = vector.load %arg11[%c0_46, %c0_47] : memref<128x256xbf16, #tpu.memory_space<vmem>>, vector<128x128xbf16>
    tpu.vector_store %arg11[%c0_46, %c0_47], %36 {strides = array<i32>} : memref<128x256xbf16, #tpu.memory_space<vmem>>, vector<128x128xbf16>,
    %54 = arith.truncf %52 : vector<128x128xf32> to vector<128x128xbf16>
    %c0_48 = arith.constant 0 : index
    %c128_49 = arith.constant 128 : index
    %55 = vector.load %arg11[%c0_48, %c128_49] : memref<128x256xbf16, #tpu.memory_space<vmem>>, vector<128x128xbf16>
    tpu.vector_store %arg11[%c0_48, %c128_49], %54 {strides = array<i32>} : memref<128x256xbf16, #tpu.memory_space<vmem>>, vector<128x128xbf16>,
    %c0_50 = arith.constant 0 : index
    %c0_51 = arith.constant 0 : index
    %56 = vector.load %arg11[%c0_50, %c0_51] : memref<128x256xbf16, #tpu.memory_space<vmem>>, vector<128x256xbf16>
    %c1_52 = arith.constant 1 : index
    %c0_53 = arith.constant 0 : index
    %c0_54 = arith.constant 0 : index
    %57 = vector.load %arg8[%c1_52, %c0_53, %c0_54] : memref<3x256x128xbf16, #tpu.memory_space<vmem>>, vector<1x256x128xbf16>
    %58 = vector.shape_cast %57 : vector<1x256x128xbf16> to vector<256x128xbf16>
    %cst_55 = arith.constant dense<0.000000e+00> : vector<128x128xf32>
    %59 = tpu.matmul %56, %58, %cst_55 {dimension_numbers = #tpu.dot_dimension_numbers<[1], [0], [0], [1], [0, 0, 1, 1], [], []>} : vector<128x256xbf16>, vector<256x128xbf16>, vector<128x128xf32> -> vector<128x128xf32>
    %c1_56 = arith.constant 1 : index
    %c0_57 = arith.constant 0 : index
    %c0_58 = arith.constant 0 : index
    %60 = vector.load %arg9[%c1_56, %c0_57, %c0_58] : memref<3x1x128xf32, #tpu.memory_space<vmem>>, vector<1x1x128xf32>
    %61 = vector.shape_cast %60 : vector<1x1x128xf32> to vector<1x128xf32>
    %62 = vector.broadcast %61 : vector<1x128xf32> to vector<128x128xf32>
    %63 = arith.addf %59, %62 : vector<128x128xf32>
    %cst_59 = arith.constant 0.000000e+00 : f32
    %64 = vector.broadcast %cst_59 : f32 to vector<128x128xf32>
    %65 = arith.maximumf %63, %64 : vector<128x128xf32>
    %66 = arith.truncf %65 : vector<128x128xf32> to vector<128x128xbf16>
    %c2 = arith.constant 2 : index
    %c0_60 = arith.constant 0 : index
    %c0_61 = arith.constant 0 : index
    %67 = vector.load %arg5[%c2, %c0_60, %c0_61] : memref<3x128x128xbf16, #tpu.memory_space<vmem>>, vector<1x128x128xbf16>
    %68 = vector.shape_cast %67 : vector<1x128x128xbf16> to vector<128x128xbf16>
    %cst_62 = arith.constant dense<0.000000e+00> : vector<128x128xf32>
    %69 = tpu.matmul %66, %68, %cst_62 {dimension_numbers = #tpu.dot_dimension_numbers<[1], [0], [0], [1], [0, 0, 1, 1], [], []>} : vector<128x128xbf16>, vector<128x128xbf16>, vector<128x128xf32> -> vector<128x128xf32>
    %70 = arith.truncf %69 : vector<128x128xf32> to vector<128x128xbf16>
    %cst_63 = arith.constant dense<0.000000e+00> : vector<128x128xf32>
    %71 = tpu.matmul %2, %70, %cst_63 {dimension_numbers = #tpu.dot_dimension_numbers<[1], [0], [0], [1], [0, 0, 1, 1], [], []>} : vector<128x128xbf16>, vector<128x128xbf16>, vector<128x128xf32> -> vector<128x128xf32>
    %c2_64 = arith.constant 2 : index
    %c0_65 = arith.constant 0 : index
    %c0_66 = arith.constant 0 : index
    %72 = vector.load %arg6[%c2_64, %c0_65, %c0_66] : memref<3x128x128xbf16, #tpu.memory_space<vmem>>, vector<1x128x128xbf16>
    %73 = vector.shape_cast %72 : vector<1x128x128xbf16> to vector<128x128xbf16>
    %cst_67 = arith.constant dense<0.000000e+00> : vector<128x128xf32>
    %74 = tpu.matmul %1, %73, %cst_67 {dimension_numbers = #tpu.dot_dimension_numbers<[1], [0], [0], [1], [0, 0, 1, 1], [], []>} : vector<128x128xbf16>, vector<128x128xbf16>, vector<128x128xf32> -> vector<128x128xf32>
    %75 = arith.addf %71, %74 : vector<128x128xf32>
    %c2_68 = arith.constant 2 : index
    %c0_69 = arith.constant 0 : index
    %c0_70 = arith.constant 0 : index
    %76 = vector.load %arg7[%c2_68, %c0_69, %c0_70] : memref<3x1x128xf32, #tpu.memory_space<vmem>>, vector<1x1x128xf32>
    %77 = vector.shape_cast %76 : vector<1x1x128xf32> to vector<1x128xf32>
    %78 = vector.broadcast %77 : vector<1x128xf32> to vector<128x128xf32>
    %79 = arith.addf %75, %78 : vector<128x128xf32>
    %80 = arith.truncf %79 : vector<128x128xf32> to vector<128x128xbf16>
    %cst_71 = arith.constant dense<0.000000e+00> : vector<128x128xf32>
    %81 = tpu.matmul %3, %80, %cst_71 {dimension_numbers = #tpu.dot_dimension_numbers<[1], [0], [0], [1], [0, 0, 1, 1], [], []>} : vector<128x128xbf16>, vector<128x128xbf16>, vector<128x128xf32> -> vector<128x128xf32>
    %82 = arith.mulf %81, %6 : vector<128x128xf32>
    %c0_72 = arith.constant 0 : index
    %c0_73 = arith.constant 0 : index
    %83 = vector.load %arg11[%c0_72, %c0_73] : memref<128x256xbf16, #tpu.memory_space<vmem>>, vector<128x128xbf16>
    tpu.vector_store %arg11[%c0_72, %c0_73], %66 {strides = array<i32>} : memref<128x256xbf16, #tpu.memory_space<vmem>>, vector<128x128xbf16>,
    %84 = arith.truncf %82 : vector<128x128xf32> to vector<128x128xbf16>
    %c0_74 = arith.constant 0 : index
    %c128_75 = arith.constant 128 : index
    %85 = vector.load %arg11[%c0_74, %c128_75] : memref<128x256xbf16, #tpu.memory_space<vmem>>, vector<128x128xbf16>
    tpu.vector_store %arg11[%c0_74, %c128_75], %84 {strides = array<i32>} : memref<128x256xbf16, #tpu.memory_space<vmem>>, vector<128x128xbf16>,
    %c0_76 = arith.constant 0 : index
    %c0_77 = arith.constant 0 : index
    %86 = vector.load %arg11[%c0_76, %c0_77] : memref<128x256xbf16, #tpu.memory_space<vmem>>, vector<128x256xbf16>
    %c2_78 = arith.constant 2 : index
    %c0_79 = arith.constant 0 : index
    %c0_80 = arith.constant 0 : index
    %87 = vector.load %arg8[%c2_78, %c0_79, %c0_80] : memref<3x256x128xbf16, #tpu.memory_space<vmem>>, vector<1x256x128xbf16>
    %88 = vector.shape_cast %87 : vector<1x256x128xbf16> to vector<256x128xbf16>
    %cst_81 = arith.constant dense<0.000000e+00> : vector<128x128xf32>
    %89 = tpu.matmul %86, %88, %cst_81 {dimension_numbers = #tpu.dot_dimension_numbers<[1], [0], [0], [1], [0, 0, 1, 1], [], []>} : vector<128x256xbf16>, vector<256x128xbf16>, vector<128x128xf32> -> vector<128x128xf32>
    %c2_82 = arith.constant 2 : index
    %c0_83 = arith.constant 0 : index
    %c0_84 = arith.constant 0 : index
    %90 = vector.load %arg9[%c2_82, %c0_83, %c0_84] : memref<3x1x128xf32, #tpu.memory_space<vmem>>, vector<1x1x128xf32>
    %91 = vector.shape_cast %90 : vector<1x1x128xf32> to vector<1x128xf32>
    %92 = vector.broadcast %91 : vector<1x128xf32> to vector<128x128xf32>
    %93 = arith.addf %89, %92 : vector<128x128xf32>
    %cst_85 = arith.constant 0.000000e+00 : f32
    %94 = vector.broadcast %cst_85 : f32 to vector<128x128xf32>
    %95 = arith.maximumf %93, %94 : vector<128x128xf32>
    %c0_86 = arith.constant 0 : index
    %c0_87 = arith.constant 0 : index
    %96 = vector.load %arg10[%c0_86, %c0_87] : memref<128x128xf32, #tpu.memory_space<vmem>>, vector<128x128xf32>
    tpu.vector_store %arg10[%c0_86, %c0_87], %95 {strides = array<i32>} : memref<128x128xf32, #tpu.memory_space<vmem>>, vector<128x128xf32>,
    return
  }
}

</mosaic_0001>

<llo_original>
// kernel: tpu_custom_call.1
$region0: #{tpu_custom_call.1}
  #allocation0 [shape = 'u32[]', space=smem, size = 0x4, offset = 0x4, fixed_abs, tag = 'smem constant byte address 0x4 - core index']
  #allocation1 [shape = 'u32[72,128]{1,0:T(1,128)}', space=vmem, size = 0x9000, scoped, tag = 'internal scratch']
  #allocation2 [shape = 'bf16[128,256]{1,0:T(8,128)(2,1)}', space=vmem, size = 0x10000, scoped, tag = 'scratch operand']
  %s0 = inlined_call_operand.vmem [shape: bf16[128,128], index: 0, kind: input, shape index: {}]
  %s1 = inlined_call_operand.vmem [shape: bf16[128,128], index: 1, kind: input, shape index: {}]
  %s2 = inlined_call_operand.hbm [shape: bf16[128,128], index: 2, kind: input, shape index: {}]
  %s3 = inlined_call_operand.hbm [shape: bf16[128,128], index: 3, kind: input, shape index: {}]
  %s4 = inlined_call_operand.vmem [shape: f32[128,1], index: 4, kind: input, shape index: {}]
  %s5 = inlined_call_operand.hbm [shape: bf16[3,128,128], index: 5, kind: input, shape index: {}]
  %s6 = inlined_call_operand.hbm [shape: bf16[3,128,128], index: 6, kind: input, shape index: {}]
  %s7 = inlined_call_operand.vmem [shape: f32[3,1,128], index: 7, kind: input, shape index: {}]
  %s8 = inlined_call_operand.hbm [shape: bf16[3,256,128], index: 8, kind: input, shape index: {}]
  %s9 = inlined_call_operand.vmem [shape: f32[3,1,128], index: 9, kind: input, shape index: {}]
  %s10 = inlined_call_operand.hbm [shape: f32[128,128], index: 10, kind: output, shape index: {}]
  %s11 = sld [smem:[#allocation0]]
  $region70: #{tpu_custom_call.1} parent=0
    _
  %s13 = ssub.s32 1, %s11
  %s14 = scalar_select 0, %s13, %s11
  $region1: #{tpu_custom_call.1} parent=0
    #allocation3 [shape = 'u8[32768]{0}', space=vmem, size = 0x8000, scoped, tag = 'input window, operand 2, single buffered']
    #allocation4 [shape = 's32[1]{0}', space=sflag, size = 0x4, scoped, tag = 'scoped memory for tpu_custom_call.1']
    #allocation5 [shape = 's32[1]{0}', space=sflag, size = 0x4, scoped, tag = 'scoped memory for tpu_custom_call.1']
    #allocation6 [shape = 'u8[32768]{0}', space=vmem, size = 0x8000, scoped, tag = 'input window, operand 3, single buffered']
    #allocation7 [shape = 's32[1]{0}', space=sflag, size = 0x4, scoped, tag = 'scoped memory for tpu_custom_call.1']
    #allocation8 [shape = 'u8[98304]{0}', space=vmem, size = 0x18000, scoped, tag = 'input window, operand 5, single buffered']
    #allocation9 [shape = 'u8[98304]{0}', space=vmem, size = 0x18000, scoped, tag = 'input window, operand 6, single buffered']
    #allocation10 [shape = 's32[1]{0}', space=sflag, size = 0x4, scoped, tag = 'scoped memory for tpu_custom_call.1']
    #allocation11 [shape = 'u8[196608]{0}', space=vmem, size = 0x30000, scoped, tag = 'input window, operand 8, single buffered']
    #allocation12 [shape = 'u8[65536]{0}', space=vmem, size = 0x10000, scoped, tag = 'output window, operand 0, single buffered']
    %15 = vsyncpa [#allocation4], 0
    %16 = vsyncpa [#allocation7], 0
    %17 = vsyncpa [#allocation10], 0
    %18 = vsyncpa [#allocation5], 0
    // Predicated region
    $region2: #{tpu_custom_call.1} parent=1 // pred_check
      _
    $region3: #{tpu_custom_call.1} parent=1 // pred_check_branch
      %20 = sbr.rel (0) target = $region5
    $region4: #{tpu_custom_call.1} parent=1 // pred_region
      _
    $region5: #{tpu_custom_call.1} parent=1 // pred_fallthru
      _
    // Predicated region
    $region6: #{tpu_custom_call.1} parent=1 // pred_check
      _
    $region7: #{tpu_custom_call.1} parent=1 // pred_check_branch
      %22 = sbr.rel (0) target = $region9
    $region8: #{tpu_custom_call.1} parent=1 // pred_region
      _
    $region9: #{tpu_custom_call.1} parent=1 // pred_fallthru
      _
    // Predicated region
    $region10: #{tpu_custom_call.1} parent=1 // pred_check
      _
    $region11: #{tpu_custom_call.1} parent=1 // pred_check_branch
      %24 = sbr.rel (0) target = $region13
    $region12: #{tpu_custom_call.1} parent=1 // pred_region
      %26 = vsyncadd [#allocation4], 0
      %s27 = sshll.u32 %s2, 4
      %s28 = int_to_ptr.hbm [resolvable:$true] %s27
      %s29 = sshll.u32 [#allocation3], 4
      %s30 = int_to_ptr.vmem [resolvable:$true] %s29
      %35 = dma.hbm_to_vmem [thread:$0]  %s28, 1024, %s30, [#allocation4], 64, 64, 4
    $region13: #{tpu_custom_call.1} parent=1 // pred_fallthru
      _
    // Predicated region
    $region14: #{tpu_custom_call.1} parent=1 // pred_check
      _
    $region15: #{tpu_custom_call.1} parent=1 // pred_check_branch
      %37 = sbr.rel (0) target = $region17
    $region16: #{tpu_custom_call.1} parent=1 // pred_region
      %39 = vsyncadd [#allocation7], 0
      %s40 = sshll.u32 %s3, 4
      %s41 = int_to_ptr.hbm [resolvable:$true] %s40
      %s42 = sshll.u32 [#allocation6], 4
      %s43 = int_to_ptr.vmem [resolvable:$true] %s42
      %48 = dma.hbm_to_vmem [thread:$0]  %s41, 1024, %s43, [#allocation7], 64, 64, 4
    $region17: #{tpu_custom_call.1} parent=1 // pred_fallthru
      _
    // Predicated region
    $region18: #{tpu_custom_call.1} parent=1 // pred_check
      _
    $region19: #{tpu_custom_call.1} parent=1 // pred_check_branch
      %50 = sbr.rel (0) target = $region21
    $region20: #{tpu_custom_call.1} parent=1 // pred_region
      _
    $region21: #{tpu_custom_call.1} parent=1 // pred_fallthru
      _
    // Predicated region
    $region22: #{tpu_custom_call.1} parent=1 // pred_check
      _
    $region23: #{tpu_custom_call.1} parent=1 // pred_check_branch
      %52 = sbr.rel (0) target = $region25
    $region24: #{tpu_custom_call.1} parent=1 // pred_region
      %54 = vsyncadd [#allocation7], 0
      %s55 = sshll.u32 %s5, 4
      %s56 = int_to_ptr.hbm [resolvable:$true] %s55
      %s57 = sshll.u32 [#allocation8], 4
      %s58 = int_to_ptr.vmem [resolvable:$true] %s57
      %63 = dma.hbm_to_vmem [thread:$0]  %s56, 3072, %s58, [#allocation7], 64, 64, 4
    $region25: #{tpu_custom_call.1} parent=1 // pred_fallthru
      _
    // Predicated region
    $region26: #{tpu_custom_call.1} parent=1 // pred_check
      _
    $region27: #{tpu_custom_call.1} parent=1 // pred_check_branch
      %65 = sbr.rel (0) target = $region29
    $region28: #{tpu_custom_call.1} parent=1 // pred_region
      %67 = vsyncadd [#allocation10], 0
      %s68 = sshll.u32 %s6, 4
      %s69 = int_to_ptr.hbm [resolvable:$true] %s68
      %s70 = sshll.u32 [#allocation9], 4
      %s71 = int_to_ptr.vmem [resolvable:$true] %s70
      %76 = dma.hbm_to_vmem [thread:$0]  %s69, 3072, %s71, [#allocation10], 64, 64, 4
    $region29: #{tpu_custom_call.1} parent=1 // pred_fallthru
      _
    // Predicated region
    $region30: #{tpu_custom_call.1} parent=1 // pred_check
      _
    $region31: #{tpu_custom_call.1} parent=1 // pred_check_branch
      %78 = sbr.rel (0) target = $region33
    $region32: #{tpu_custom_call.1} parent=1 // pred_region
      _
    $region33: #{tpu_custom_call.1} parent=1 // pred_fallthru
      _
    // Predicated region
    $region34: #{tpu_custom_call.1} parent=1 // pred_check
      _
    $region35: #{tpu_custom_call.1} parent=1 // pred_check_branch
      %80 = sbr.rel (0) target = $region37
    $region36: #{tpu_custom_call.1} parent=1 // pred_region
      %82 = vsyncadd [#allocation10], 0
      %s83 = sshll.u32 %s8, 4
      %s84 = int_to_ptr.hbm [resolvable:$true] %s83
      %s85 = sshll.u32 [#allocation11], 4
      %s86 = int_to_ptr.vmem [resolvable:$true] %s85
      %91 = dma.hbm_to_vmem [thread:$0]  %s84, 6144, %s86, [#allocation10], 64, 64, 4
    $region37: #{tpu_custom_call.1} parent=1 // pred_fallthru
      _
    // Predicated region
    $region38: #{tpu_custom_call.1} parent=1 // pred_check
      _
    $region39: #{tpu_custom_call.1} parent=1 // pred_check_branch
      %93 = sbr.rel (0) target = $region41
    $region40: #{tpu_custom_call.1} parent=1 // pred_region
      _
    $region41: #{tpu_custom_call.1} parent=1 // pred_fallthru
      _
    // Predicated region
    $region42: #{tpu_custom_call.1} parent=1 // pred_check
      _
    $region43: #{tpu_custom_call.1} parent=1 // pred_check_branch
      %95 = sbr.rel (0) target = $region45
    $region44: #{tpu_custom_call.1} parent=1 // pred_region
      %97 = dma.done [#allocation4], 1024
    $region45: #{tpu_custom_call.1} parent=1 // pred_fallthru
      _
    // Predicated region
    $region46: #{tpu_custom_call.1} parent=1 // pred_check
      _
    $region47: #{tpu_custom_call.1} parent=1 // pred_check_branch
      %99 = sbr.rel (0) target = $region49
    $region48: #{tpu_custom_call.1} parent=1 // pred_region
      %101 = dma.done [#allocation7], 1024
    $region49: #{tpu_custom_call.1} parent=1 // pred_fallthru
      _
    // Predicated region
    $region50: #{tpu_custom_call.1} parent=1 // pred_check
      _
    $region51: #{tpu_custom_call.1} parent=1 // pred_check_branch
      %103 = sbr.rel (0) target = $region53
    $region52: #{tpu_custom_call.1} parent=1 // pred_region
      %105 = dma.done [#allocation7], 3072
    $region53: #{tpu_custom_call.1} parent=1 // pred_fallthru
      _
    // Predicated region
    $region54: #{tpu_custom_call.1} parent=1 // pred_check
      _
    $region55: #{tpu_custom_call.1} parent=1 // pred_check_branch
      %107 = sbr.rel (0) target = $region57
    $region56: #{tpu_custom_call.1} parent=1 // pred_region
      %109 = dma.done [#allocation10], 3072
    $region57: #{tpu_custom_call.1} parent=1 // pred_fallthru
      _
    // Predicated region
    $region58: #{tpu_custom_call.1} parent=1 // pred_check
      _
    $region59: #{tpu_custom_call.1} parent=1 // pred_check_branch
      %111 = sbr.rel (0) target = $region61
    $region60: #{tpu_custom_call.1} parent=1 // pred_region
      %113 = dma.done [#allocation10], 6144
    $region61: #{tpu_custom_call.1} parent=1 // pred_fallthru
      _
    %v114 = vld [vmem:[%s0] sm:$0xf]
    %v115 = vld [vmem:[%s0 + $0x4] sm:$0xf]
    %v116 = vld [vmem:[%s0 + $0x8] sm:$0xf]
    %v117 = vld [vmem:[%s0 + $0xc] sm:$0xf]
    %v118 = vld [vmem:[%s0 + $0x10] sm:$0xf]
    %v119 = vld [vmem:[%s0 + $0x14] sm:$0xf]
    %v120 = vld [vmem:[%s0 + $0x18] sm:$0xf]
    %v121 = vld [vmem:[%s0 + $0x1c] sm:$0xf]
    %v122 = vld [vmem:[%s0 + $0x20] sm:$0xf]
    %v123 = vld [vmem:[%s0 + $0x24] sm:$0xf]
    %v124 = vld [vmem:[%s0 + $0x28] sm:$0xf]
    %v125 = vld [vmem:[%s0 + $0x2c] sm:$0xf]
    %v126 = vld [vmem:[%s0 + $0x30] sm:$0xf]
    %v127 = vld [vmem:[%s0 + $0x34] sm:$0xf]
    %v128 = vld [vmem:[%s0 + $0x38] sm:$0xf]
    %v129 = vld [vmem:[%s0 + $0x3c] sm:$0xf]
    %v130 = vld [vmem:[%s1] sm:$0xf]
    %v131 = vld [vmem:[%s1 + $0x4] sm:$0xf]
    %v132 = vld [vmem:[%s1 + $0x8] sm:$0xf]
    %v133 = vld [vmem:[%s1 + $0xc] sm:$0xf]
    %v134 = vld [vmem:[%s1 + $0x10] sm:$0xf]
    %v135 = vld [vmem:[%s1 + $0x14] sm:$0xf]
    %v136 = vld [vmem:[%s1 + $0x18] sm:$0xf]
    %v137 = vld [vmem:[%s1 + $0x1c] sm:$0xf]
    %v138 = vld [vmem:[%s1 + $0x20] sm:$0xf]
    %v139 = vld [vmem:[%s1 + $0x24] sm:$0xf]
    %v140 = vld [vmem:[%s1 + $0x28] sm:$0xf]
    %v141 = vld [vmem:[%s1 + $0x2c] sm:$0xf]
    %v142 = vld [vmem:[%s1 + $0x30] sm:$0xf]
    %v143 = vld [vmem:[%s1 + $0x34] sm:$0xf]
    %v144 = vld [vmem:[%s1 + $0x38] sm:$0xf]
    %v145 = vld [vmem:[%s1 + $0x3c] sm:$0xf]
    %v146 = vld [vmem:[#allocation3] sm:$0xf]
    %v147 = vld [vmem:[#allocation3 + $0x4] sm:$0xf]
    %v148 = vld [vmem:[#allocation3 + $0x8] sm:$0xf]
    %v149 = vld [vmem:[#allocation3 + $0xc] sm:$0xf]
    %v150 = vld [vmem:[#allocation3 + $0x10] sm:$0xf]
    %v151 = vld [vmem:[#allocation3 + $0x14] sm:$0xf]
    %v152 = vld [vmem:[#allocation3 + $0x18] sm:$0xf]
    %v153 = vld [vmem:[#allocation3 + $0x1c] sm:$0xf]
    %v154 = vld [vmem:[#allocation3 + $0x20] sm:$0xf]
    %v155 = vld [vmem:[#allocation3 + $0x24] sm:$0xf]
    %v156 = vld [vmem:[#allocation3 + $0x28] sm:$0xf]
    %v157 = vld [vmem:[#allocation3 + $0x2c] sm:$0xf]
    %v158 = vld [vmem:[#allocation3 + $0x30] sm:$0xf]
    %v159 = vld [vmem:[#allocation3 + $0x34] sm:$0xf]
    %v160 = vld [vmem:[#allocation3 + $0x38] sm:$0xf]
    %v161 = vld [vmem:[#allocation3 + $0x3c] sm:$0xf]
    %v162 = vld [vmem:[#allocation6] sm:$0xf]
    %v163 = vld [vmem:[#allocation6 + $0x4] sm:$0xf]
    %v164 = vld [vmem:[#allocation6 + $0x8] sm:$0xf]
    %v165 = vld [vmem:[#allocation6 + $0xc] sm:$0xf]
    %v166 = vld [vmem:[#allocation6 + $0x10] sm:$0xf]
    %v167 = vld [vmem:[#allocation6 + $0x14] sm:$0xf]
    %v168 = vld [vmem:[#allocation6 + $0x18] sm:$0xf]
    %v169 = vld [vmem:[#allocation6 + $0x1c] sm:$0xf]
    %v170 = vld [vmem:[#allocation6 + $0x20] sm:$0xf]
    %v171 = vld [vmem:[#allocation6 + $0x24] sm:$0xf]
    %v172 = vld [vmem:[#allocation6 + $0x28] sm:$0xf]
    %v173 = vld [vmem:[#allocation6 + $0x2c] sm:$0xf]
    %v174 = vld [vmem:[#allocation6 + $0x30] sm:$0xf]
    %v175 = vld [vmem:[#allocation6 + $0x34] sm:$0xf]
    %v176 = vld [vmem:[#allocation6 + $0x38] sm:$0xf]
    %v177 = vld [vmem:[#allocation6 + $0x3c] sm:$0xf]
    %v178 = vld [vmem:[%s4] sm:$0xff]
    %v179 = vld [vmem:[%s4 + $0x8] sm:$0xff]
    %v180 = vld [vmem:[%s4 + $0x10] sm:$0xff]
    %v181 = vld [vmem:[%s4 + $0x18] sm:$0xff]
    %v182 = vld [vmem:[%s4 + $0x20] sm:$0xff]
    %v183 = vld [vmem:[%s4 + $0x28] sm:$0xff]
    %v184 = vld [vmem:[%s4 + $0x30] sm:$0xff]
    %v185 = vld [vmem:[%s4 + $0x38] sm:$0xff]
    %v186 = vld [vmem:[%s4 + $0x40] sm:$0xff]
    %v187 = vld [vmem:[%s4 + $0x48] sm:$0xff]
    %v188 = vld [vmem:[%s4 + $0x50] sm:$0xff]
    %v189 = vld [vmem:[%s4 + $0x58] sm:$0xff]
    %v190 = vld [vmem:[%s4 + $0x60] sm:$0xff]
    %v191 = vld [vmem:[%s4 + $0x68] sm:$0xff]
    %v192 = vld [vmem:[%s4 + $0x70] sm:$0xff]
    %v193 = vld [vmem:[%s4 + $0x78] sm:$0xff]
    %195 = vset.pattern.permute.xlu0 0
    %196 = vperm.xlu0 %195, %v178
    %v197 = vpop.permute.xlu0 %196
    %200 = vset.pattern.permute.xlu0 0
    %201 = vperm.xlu0 %200, %v179
    %v202 = vpop.permute.xlu0 %201
    %205 = vset.pattern.permute.xlu0 0
    %206 = vperm.xlu0 %205, %v180
    %v207 = vpop.permute.xlu0 %206
    %210 = vset.pattern.permute.xlu0 0
    %211 = vperm.xlu0 %210, %v181
    %v212 = vpop.permute.xlu0 %211
    %215 = vset.pattern.permute.xlu0 0
    %216 = vperm.xlu0 %215, %v182
    %v217 = vpop.permute.xlu0 %216
    %220 = vset.pattern.permute.xlu0 0
    %221 = vperm.xlu0 %220, %v183
    %v222 = vpop.permute.xlu0 %221
    %225 = vset.pattern.permute.xlu0 0
    %226 = vperm.xlu0 %225, %v184
    %v227 = vpop.permute.xlu0 %226
    %230 = vset.pattern.permute.xlu0 0
    %231 = vperm.xlu0 %230, %v185
    %v232 = vpop.permute.xlu0 %231
    %235 = vset.pattern.permute.xlu0 0
    %236 = vperm.xlu0 %235, %v186
    %v237 = vpop.permute.xlu0 %236
    %240 = vset.pattern.permute.xlu0 0
    %241 = vperm.xlu0 %240, %v187
    %v242 = vpop.permute.xlu0 %241
    %245 = vset.pattern.permute.xlu0 0
    %246 = vperm.xlu0 %245, %v188
    %v247 = vpop.permute.xlu0 %246
    %250 = vset.pattern.permute.xlu0 0
    %251 = vperm.xlu0 %250, %v189
    %v252 = vpop.permute.xlu0 %251
    %255 = vset.pattern.permute.xlu0 0
    %256 = vperm.xlu0 %255, %v190
    %v257 = vpop.permute.xlu0 %256
    %260 = vset.pattern.permute.xlu0 0
    %261 = vperm.xlu0 %260, %v191
    %v262 = vpop.permute.xlu0 %261
    %265 = vset.pattern.permute.xlu0 0
    %266 = vperm.xlu0 %265, %v192
    %v267 = vpop.permute.xlu0 %266
    %270 = vset.pattern.permute.xlu0 0
    %271 = vperm.xlu0 %270, %v193
    %v272 = vpop.permute.xlu0 %271
    %v274 = vld [vmem:[#allocation8] sm:$0xf]
    %v275 = vld [vmem:[#allocation8 + $0x4] sm:$0xf]
    %v276 = vld [vmem:[#allocation8 + $0x8] sm:$0xf]
    %v277 = vld [vmem:[#allocation8 + $0xc] sm:$0xf]
    %v278 = vld [vmem:[#allocation8 + $0x10] sm:$0xf]
    %v279 = vld [vmem:[#allocation8 + $0x14] sm:$0xf]
    %v280 = vld [vmem:[#allocation8 + $0x18] sm:$0xf]
    %v281 = vld [vmem:[#allocation8 + $0x1c] sm:$0xf]
    %v282 = vld [vmem:[#allocation8 + $0x20] sm:$0xf]
    %v283 = vld [vmem:[#allocation8 + $0x24] sm:$0xf]
    %v284 = vld [vmem:[#allocation8 + $0x28] sm:$0xf]
    %v285 = vld [vmem:[#allocation8 + $0x2c] sm:$0xf]
    %v286 = vld [vmem:[#allocation8 + $0x30] sm:$0xf]
    %v287 = vld [vmem:[#allocation8 + $0x34] sm:$0xf]
    %v288 = vld [vmem:[#allocation8 + $0x38] sm:$0xf]
    %v289 = vld [vmem:[#allocation8 + $0x3c] sm:$0xf]
    %v306 = vunpack.c.l.b16 %v114
    %v307 = vunpack.c.l.b16 %v115
    %v308 = vunpack.c.l.b16 %v116
    %v309 = vunpack.c.l.b16 %v117
    %v310 = vunpack.c.l.b16 %v118
    %v311 = vunpack.c.l.b16 %v119
    %v312 = vunpack.c.l.b16 %v120
    %v313 = vunpack.c.l.b16 %v121
    %v314 = vunpack.c.l.b16 %v122
    %v315 = vunpack.c.l.b16 %v123
    %v316 = vunpack.c.l.b16 %v124
    %v317 = vunpack.c.l.b16 %v125
    %v318 = vunpack.c.l.b16 %v126
    %v319 = vunpack.c.l.b16 %v127
    %v320 = vunpack.c.l.b16 %v128
    %v321 = vunpack.c.l.b16 %v129
    %v322 = vpack.c.b16 %v307, %v306
    %v323 = vpack.c.b16 %v309, %v308
    %v324 = vpack.c.b16 %v311, %v310
    %v325 = vpack.c.b16 %v313, %v312
    %v326 = vpack.c.b16 %v315, %v314
    %v327 = vpack.c.b16 %v317, %v316
    %v328 = vpack.c.b16 %v319, %v318
    %v329 = vpack.c.b16 %v321, %v320
    %v354 = vunpack.c.l.b16 %v274
    %v355 = vunpack.c.l.b16 %v275
    %v356 = vunpack.c.l.b16 %v276
    %v357 = vunpack.c.l.b16 %v277
    %v358 = vunpack.c.l.b16 %v278
    %v359 = vunpack.c.l.b16 %v279
    %v360 = vunpack.c.l.b16 %v280
    %v361 = vunpack.c.l.b16 %v281
    %v362 = vunpack.c.l.b16 %v282
    %v363 = vunpack.c.l.b16 %v283
    %v364 = vunpack.c.l.b16 %v284
    %v365 = vunpack.c.l.b16 %v285
    %v366 = vunpack.c.l.b16 %v286
    %v367 = vunpack.c.l.b16 %v287
    %v368 = vunpack.c.l.b16 %v288
    %v369 = vunpack.c.l.b16 %v289
    %v370 = vpack.c.b16 %v355, %v354
    %v371 = vpack.c.b16 %v357, %v356
    %v372 = vpack.c.b16 %v359, %v358
    %v373 = vpack.c.b16 %v361, %v360
    %v374 = vpack.c.b16 %v363, %v362
    %v375 = vpack.c.b16 %v365, %v364
    %v376 = vpack.c.b16 %v367, %v366
    %v377 = vpack.c.b16 %v369, %v368
    %386 = vmatpush.bf16.msra.mxu0 %v377
    %387 = vmatpush.bf16.msra.mxu0 %v376
    %388 = vmatpush.bf16.msra.mxu0 %v375
    %389 = vmatpush.bf16.msra.mxu0 %v374
    %390 = vmatpush.bf16.msra.mxu0 %v373
    %391 = vmatpush.bf16.msra.mxu0 %v372
    %392 = vmatpush.bf16.msra.mxu0 %v371
    %393 = vmatpush.bf16.msra.mxu0 %v370
    %394 = vmatmul.bf16.gmra.mxu0 %v322
    %v395 = vpop.f32.mrf.mxu0
    %v396 = vadd.f32 0.0, %v395
    %v397 = vpop.f32.mrf.mxu0
    %v398 = vadd.f32 0.0, %v397
    %399 = vmatmul.bf16.gmra.mxu0 %v323
    %v400 = vpop.f32.mrf.mxu0
    %v401 = vadd.f32 0.0, %v400
    %v402 = vpop.f32.mrf.mxu0
    %v403 = vadd.f32 0.0, %v402
    %404 = vmatmul.bf16.gmra.mxu0 %v324
    %v405 = vpop.f32.mrf.mxu0
    %v406 = vadd.f32 0.0, %v405
    %v407 = vpop.f32.mrf.mxu0
    %v408 = vadd.f32 0.0, %v407
    %409 = vmatmul.bf16.gmra.mxu0 %v325
    %v410 = vpop.f32.mrf.mxu0
    %v411 = vadd.f32 0.0, %v410
    %v412 = vpop.f32.mrf.mxu0
    %v413 = vadd.f32 0.0, %v412
    %414 = vmatmul.bf16.gmra.mxu0 %v326
    %v415 = vpop.f32.mrf.mxu0
    %v416 = vadd.f32 0.0, %v415
    %v417 = vpop.f32.mrf.mxu0
    %v418 = vadd.f32 0.0, %v417
    %419 = vmatmul.bf16.gmra.mxu0 %v327
    %v420 = vpop.f32.mrf.mxu0
    %v421 = vadd.f32 0.0, %v420
    %v422 = vpop.f32.mrf.mxu0
    %v423 = vadd.f32 0.0, %v422
    %424 = vmatmul.bf16.gmra.mxu0 %v328
    %v425 = vpop.f32.mrf.mxu0
    %v426 = vadd.f32 0.0, %v425
    %v427 = vpop.f32.mrf.mxu0
    %v428 = vadd.f32 0.0, %v427
    %429 = vmatmul.bf16.gmra.mxu0 %v329
    %v430 = vpop.f32.mrf.mxu0
    %v431 = vadd.f32 0.0, %v430
    %v432 = vpop.f32.mrf.mxu0
    %v433 = vadd.f32 0.0, %v432
    %434 = vdwg.mxu0
    %v435 = vpack.c.bf16 %v398, %v396
    %v436 = vpack.c.bf16 %v403, %v401
    %v437 = vpack.c.bf16 %v408, %v406
    %v438 = vpack.c.bf16 %v413, %v411
    %v439 = vpack.c.bf16 %v418, %v416
    %v440 = vpack.c.bf16 %v423, %v421
    %v441 = vpack.c.bf16 %v428, %v426
    %v442 = vpack.c.bf16 %v433, %v431
    %v443 = vld [vmem:[#allocation9] sm:$0xf]
    %v444 = vld [vmem:[#allocation9 + $0x4] sm:$0xf]
    %v445 = vld [vmem:[#allocation9 + $0x8] sm:$0xf]
    %v446 = vld [vmem:[#allocation9 + $0xc] sm:$0xf]
    %v447 = vld [vmem:[#allocation9 + $0x10] sm:$0xf]
    %v448 = vld [vmem:[#allocation9 + $0x14] sm:$0xf]
    %v449 = vld [vmem:[#allocation9 + $0x18] sm:$0xf]
    %v450 = vld [vmem:[#allocation9 + $0x1c] sm:$0xf]
    %v451 = vld [vmem:[#allocation9 + $0x20] sm:$0xf]
    %v452 = vld [vmem:[#allocation9 + $0x24] sm:$0xf]
    %v453 = vld [vmem:[#allocation9 + $0x28] sm:$0xf]
    %v454 = vld [vmem:[#allocation9 + $0x2c] sm:$0xf]
    %v455 = vld [vmem:[#allocation9 + $0x30] sm:$0xf]
    %v456 = vld [vmem:[#allocation9 + $0x34] sm:$0xf]
    %v457 = vld [vmem:[#allocation9 + $0x38] sm:$0xf]
    %v458 = vld [vmem:[#allocation9 + $0x3c] sm:$0xf]
    %v475 = vunpack.c.l.b16 %v130
    %v476 = vunpack.c.l.b16 %v131
    %v477 = vunpack.c.l.b16 %v132
    %v478 = vunpack.c.l.b16 %v133
    %v479 = vunpack.c.l.b16 %v134
    %v480 = vunpack.c.l.b16 %v135
    %v481 = vunpack.c.l.b16 %v136
    %v482 = vunpack.c.l.b16 %v137
    %v483 = vunpack.c.l.b16 %v138
    %v484 = vunpack.c.l.b16 %v139
    %v485 = vunpack.c.l.b16 %v140
    %v486 = vunpack.c.l.b16 %v141
    %v487 = vunpack.c.l.b16 %v142
    %v488 = vunpack.c.l.b16 %v143
    %v489 = vunpack.c.l.b16 %v144
    %v490 = vunpack.c.l.b16 %v145
    %v491 = vpack.c.b16 %v476, %v475
    %v492 = vpack.c.b16 %v478, %v477
    %v493 = vpack.c.b16 %v480, %v479
    %v494 = vpack.c.b16 %v482, %v481
    %v495 = vpack.c.b16 %v484, %v483
    %v496 = vpack.c.b16 %v486, %v485
    %v497 = vpack.c.b16 %v488, %v487
    %v498 = vpack.c.b16 %v490, %v489
    %v523 = vunpack.c.l.b16 %v443
    %v524 = vunpack.c.l.b16 %v444
    %v525 = vunpack.c.l.b16 %v445
    %v526 = vunpack.c.l.b16 %v446
    %v527 = vunpack.c.l.b16 %v447
    %v528 = vunpack.c.l.b16 %v448
    %v529 = vunpack.c.l.b16 %v449
    %v530 = vunpack.c.l.b16 %v450
    %v531 = vunpack.c.l.b16 %v451
    %v532 = vunpack.c.l.b16 %v452
    %v533 = vunpack.c.l.b16 %v453
    %v534 = vunpack.c.l.b16 %v454
    %v535 = vunpack.c.l.b16 %v455
    %v536 = vunpack.c.l.b16 %v456
    %v537 = vunpack.c.l.b16 %v457
    %v538 = vunpack.c.l.b16 %v458
    %v539 = vpack.c.b16 %v524, %v523
    %v540 = vpack.c.b16 %v526, %v525
    %v541 = vpack.c.b16 %v528, %v527
    %v542 = vpack.c.b16 %v530, %v529
    %v543 = vpack.c.b16 %v532, %v531
    %v544 = vpack.c.b16 %v534, %v533
    %v545 = vpack.c.b16 %v536, %v535
    %v546 = vpack.c.b16 %v538, %v537
    %555 = vmatpush.bf16.msra.mxu0 %v546
    %556 = vmatpush.bf16.msra.mxu0 %v545
    %557 = vmatpush.bf16.msra.mxu0 %v544
    %558 = vmatpush.bf16.msra.mxu0 %v543
    %559 = vmatpush.bf16.msra.mxu0 %v542
    %560 = vmatpush.bf16.msra.mxu0 %v541
    %561 = vmatpush.bf16.msra.mxu0 %v540
    %562 = vmatpush.bf16.msra.mxu0 %v539
    %563 = vmatmul.bf16.gmra.mxu0 %v491
    %v564 = vpop.f32.mrf.mxu0
    %v565 = vadd.f32 0.0, %v564
    %v566 = vpop.f32.mrf.mxu0
    %v567 = vadd.f32 0.0, %v566
    %568 = vmatmul.bf16.gmra.mxu0 %v492
    %v569 = vpop.f32.mrf.mxu0
    %v570 = vadd.f32 0.0, %v569
    %v571 = vpop.f32.mrf.mxu0
    %v572 = vadd.f32 0.0, %v571
    %573 = vmatmul.bf16.gmra.mxu0 %v493
    %v574 = vpop.f32.mrf.mxu0
    %v575 = vadd.f32 0.0, %v574
    %v576 = vpop.f32.mrf.mxu0
    %v577 = vadd.f32 0.0, %v576
    %578 = vmatmul.bf16.gmra.mxu0 %v494
    %v579 = vpop.f32.mrf.mxu0
    %v580 = vadd.f32 0.0, %v579
    %v581 = vpop.f32.mrf.mxu0
    %v582 = vadd.f32 0.0, %v581
    %583 = vmatmul.bf16.gmra.mxu0 %v495
    %v584 = vpop.f32.mrf.mxu0
    %v585 = vadd.f32 0.0, %v584
    %v586 = vpop.f32.mrf.mxu0
    %v587 = vadd.f32 0.0, %v586
    %588 = vmatmul.bf16.gmra.mxu0 %v496
    %v589 = vpop.f32.mrf.mxu0
    %v590 = vadd.f32 0.0, %v589
    %v591 = vpop.f32.mrf.mxu0
    %v592 = vadd.f32 0.0, %v591
    %593 = vmatmul.bf16.gmra.mxu0 %v497
    %v594 = vpop.f32.mrf.mxu0
    %v595 = vadd.f32 0.0, %v594
    %v596 = vpop.f32.mrf.mxu0
    %v597 = vadd.f32 0.0, %v596
    %598 = vmatmul.bf16.gmra.mxu0 %v498
    %v599 = vpop.f32.mrf.mxu0
    %v600 = vadd.f32 0.0, %v599
    %v601 = vpop.f32.mrf.mxu0
    %v602 = vadd.f32 0.0, %v601
    %603 = vdwg.mxu0
    %v620 = vunpack.c.l.b16 %v146
    %v621 = vunpack.c.l.b16 %v147
    %v622 = vunpack.c.l.b16 %v148
    %v623 = vunpack.c.l.b16 %v149
    %v624 = vunpack.c.l.b16 %v150
    %v625 = vunpack.c.l.b16 %v151
    %v626 = vunpack.c.l.b16 %v152
    %v627 = vunpack.c.l.b16 %v153
    %v628 = vunpack.c.l.b16 %v154
    %v629 = vunpack.c.l.b16 %v155
    %v630 = vunpack.c.l.b16 %v156
    %v631 = vunpack.c.l.b16 %v157
    %v632 = vunpack.c.l.b16 %v158
    %v633 = vunpack.c.l.b16 %v159
    %v634 = vunpack.c.l.b16 %v160
    %v635 = vunpack.c.l.b16 %v161
    %v636 = vpack.c.b16 %v621, %v620
    %v637 = vpack.c.b16 %v623, %v622
    %v638 = vpack.c.b16 %v625, %v624
    %v639 = vpack.c.b16 %v627, %v626
    %v640 = vpack.c.b16 %v629, %v628
    %v641 = vpack.c.b16 %v631, %v630
    %v642 = vpack.c.b16 %v633, %v632
    %v643 = vpack.c.b16 %v635, %v634
    %652 = vmatpush.bf16.msra.mxu0 %v442
    %653 = vmatpush.bf16.msra.mxu0 %v441
    %654 = vmatpush.bf16.msra.mxu0 %v440
    %655 = vmatpush.bf16.msra.mxu0 %v439
    %656 = vmatpush.bf16.msra.mxu0 %v438
    %657 = vmatpush.bf16.msra.mxu0 %v437
    %658 = vmatpush.bf16.msra.mxu0 %v436
    %659 = vmatpush.bf16.msra.mxu0 %v435
    %660 = vmatmul.bf16.gmra.mxu0 %v636
    %v661 = vpop.f32.mrf.mxu0
    %v662 = vadd.f32 %v565, %v661
    %v663 = vpop.f32.mrf.mxu0
    %v664 = vadd.f32 %v567, %v663
    %665 = vmatmul.bf16.gmra.mxu0 %v637
    %v666 = vpop.f32.mrf.mxu0
    %v667 = vadd.f32 %v570, %v666
    %v668 = vpop.f32.mrf.mxu0
    %v669 = vadd.f32 %v572, %v668
    %670 = vmatmul.bf16.gmra.mxu0 %v638
    %v671 = vpop.f32.mrf.mxu0
    %v672 = vadd.f32 %v575, %v671
    %v673 = vpop.f32.mrf.mxu0
    %v674 = vadd.f32 %v577, %v673
    %675 = vmatmul.bf16.gmra.mxu0 %v639
    %v676 = vpop.f32.mrf.mxu0
    %v677 = vadd.f32 %v580, %v676
    %v678 = vpop.f32.mrf.mxu0
    %v679 = vadd.f32 %v582, %v678
    %680 = vmatmul.bf16.gmra.mxu0 %v640
    %v681 = vpop.f32.mrf.mxu0
    %v682 = vadd.f32 %v585, %v681
    %v683 = vpop.f32.mrf.mxu0
    %v684 = vadd.f32 %v587, %v683
    %685 = vmatmul.bf16.gmra.mxu0 %v641
    %v686 = vpop.f32.mrf.mxu0
    %v687 = vadd.f32 %v590, %v686
    %v688 = vpop.f32.mrf.mxu0
    %v689 = vadd.f32 %v592, %v688
    %690 = vmatmul.bf16.gmra.mxu0 %v642
    %v691 = vpop.f32.mrf.mxu0
    %v692 = vadd.f32 %v595, %v691
    %v693 = vpop.f32.mrf.mxu0
    %v694 = vadd.f32 %v597, %v693
    %695 = vmatmul.bf16.gmra.mxu0 %v643
    %v696 = vpop.f32.mrf.mxu0
    %v697 = vadd.f32 %v600, %v696
    %v698 = vpop.f32.mrf.mxu0
    %v699 = vadd.f32 %v602, %v698
    %700 = vdwg.mxu0
    %v701 = vld [vmem:[%s7] sm:$0x1]
    %v703 = vperm.slane %v701, 0
    %v705 = vadd.f32 %v662, %v703
    %v706 = vadd.f32 %v664, %v703
    %v707 = vadd.f32 %v667, %v703
    %v708 = vadd.f32 %v669, %v703
    %v709 = vadd.f32 %v672, %v703
    %v710 = vadd.f32 %v674, %v703
    %v711 = vadd.f32 %v677, %v703
    %v712 = vadd.f32 %v679, %v703
    %v713 = vadd.f32 %v682, %v703
    %v714 = vadd.f32 %v684, %v703
    %v715 = vadd.f32 %v687, %v703
    %v716 = vadd.f32 %v689, %v703
    %v717 = vadd.f32 %v692, %v703
    %v718 = vadd.f32 %v694, %v703
    %v719 = vadd.f32 %v697, %v703
    %v720 = vadd.f32 %v699, %v703
    %v721 = vpack.c.bf16 %v706, %v705
    %v722 = vpack.c.bf16 %v708, %v707
    %v723 = vpack.c.bf16 %v710, %v709
    %v724 = vpack.c.bf16 %v712, %v711
    %v725 = vpack.c.bf16 %v714, %v713
    %v726 = vpack.c.bf16 %v716, %v715
    %v727 = vpack.c.bf16 %v718, %v717
    %v728 = vpack.c.bf16 %v720, %v719
    %v745 = vunpack.c.l.b16 %v162
    %v746 = vunpack.c.l.b16 %v163
    %v747 = vunpack.c.l.b16 %v164
    %v748 = vunpack.c.l.b16 %v165
    %v749 = vunpack.c.l.b16 %v166
    %v750 = vunpack.c.l.b16 %v167
    %v751 = vunpack.c.l.b16 %v168
    %v752 = vunpack.c.l.b16 %v169
    %v753 = vunpack.c.l.b16 %v170
    %v754 = vunpack.c.l.b16 %v171
    %v755 = vunpack.c.l.b16 %v172
    %v756 = vunpack.c.l.b16 %v173
    %v757 = vunpack.c.l.b16 %v174
    %v758 = vunpack.c.l.b16 %v175
    %v759 = vunpack.c.l.b16 %v176
    %v760 = vunpack.c.l.b16 %v177
    %v761 = vpack.c.b16 %v746, %v745
    %v762 = vpack.c.b16 %v748, %v747
    %v763 = vpack.c.b16 %v750, %v749
    %v764 = vpack.c.b16 %v752, %v751
    %v765 = vpack.c.b16 %v754, %v753
    %v766 = vpack.c.b16 %v756, %v755
    %v767 = vpack.c.b16 %v758, %v757
    %v768 = vpack.c.b16 %v760, %v759
    %777 = vmatpush.bf16.msra.mxu0 %v728
    %778 = vmatpush.bf16.msra.mxu0 %v727
    %779 = vmatpush.bf16.msra.mxu0 %v726
    %780 = vmatpush.bf16.msra.mxu0 %v725
    %781 = vmatpush.bf16.msra.mxu0 %v724
    %782 = vmatpush.bf16.msra.mxu0 %v723
    %783 = vmatpush.bf16.msra.mxu0 %v722
    %784 = vmatpush.bf16.msra.mxu0 %v721
    %785 = vmatmul.bf16.gmra.mxu0 %v761
    %v786 = vpop.f32.mrf.mxu0
    %v787 = vadd.f32 0.0, %v786
    %v788 = vpop.f32.mrf.mxu0
    %v789 = vadd.f32 0.0, %v788
    %790 = vmatmul.bf16.gmra.mxu0 %v762
    %v791 = vpop.f32.mrf.mxu0
    %v792 = vadd.f32 0.0, %v791
    %v793 = vpop.f32.mrf.mxu0
    %v794 = vadd.f32 0.0, %v793
    %795 = vmatmul.bf16.gmra.mxu0 %v763
    %v796 = vpop.f32.mrf.mxu0
    %v797 = vadd.f32 0.0, %v796
    %v798 = vpop.f32.mrf.mxu0
    %v799 = vadd.f32 0.0, %v798
    %800 = vmatmul.bf16.gmra.mxu0 %v764
    %v801 = vpop.f32.mrf.mxu0
    %v802 = vadd.f32 0.0, %v801
    %v803 = vpop.f32.mrf.mxu0
    %v804 = vadd.f32 0.0, %v803
    %805 = vmatmul.bf16.gmra.mxu0 %v765
    %v806 = vpop.f32.mrf.mxu0
    %v807 = vadd.f32 0.0, %v806
    %v808 = vpop.f32.mrf.mxu0
    %v809 = vadd.f32 0.0, %v808
    %810 = vmatmul.bf16.gmra.mxu0 %v766
    %v811 = vpop.f32.mrf.mxu0
    %v812 = vadd.f32 0.0, %v811
    %v813 = vpop.f32.mrf.mxu0
    %v814 = vadd.f32 0.0, %v813
    %815 = vmatmul.bf16.gmra.mxu0 %v767
    %v816 = vpop.f32.mrf.mxu0
    %v817 = vadd.f32 0.0, %v816
    %v818 = vpop.f32.mrf.mxu0
    %v819 = vadd.f32 0.0, %v818
    %820 = vmatmul.bf16.gmra.mxu0 %v768
    %v821 = vpop.f32.mrf.mxu0
    %v822 = vadd.f32 0.0, %v821
    %v823 = vpop.f32.mrf.mxu0
    %v824 = vadd.f32 0.0, %v823
    %825 = vdwg.mxu0
    %v826 = vmul.f32 %v787, %v197
    %v827 = vmul.f32 %v789, %v202
    %v828 = vmul.f32 %v792, %v207
    %v829 = vmul.f32 %v794, %v212
    %v830 = vmul.f32 %v797, %v217
    %v831 = vmul.f32 %v799, %v222
    %v832 = vmul.f32 %v802, %v227
    %v833 = vmul.f32 %v804, %v232
    %v834 = vmul.f32 %v807, %v237
    %v835 = vmul.f32 %v809, %v242
    %v836 = vmul.f32 %v812, %v247
    %v837 = vmul.f32 %v814, %v252
    %v838 = vmul.f32 %v817, %v257
    %v839 = vmul.f32 %v819, %v262
    %v840 = vmul.f32 %v822, %v267
    %v841 = vmul.f32 %v824, %v272
    %842 = vst [vmem:[#allocation2] sm:$0xf] %v114
    %843 = vst [vmem:[#allocation2 + $0x8] sm:$0xf] %v115
    %844 = vst [vmem:[#allocation2 + $0x10] sm:$0xf] %v116
    %845 = vst [vmem:[#allocation2 + $0x18] sm:$0xf] %v117
    %846 = vst [vmem:[#allocation2 + $0x20] sm:$0xf] %v118
    %847 = vst [vmem:[#allocation2 + $0x28] sm:$0xf] %v119
    %848 = vst [vmem:[#allocation2 + $0x30] sm:$0xf] %v120
    %849 = vst [vmem:[#allocation2 + $0x38] sm:$0xf] %v121
    %850 = vst [vmem:[#allocation2 + $0x40] sm:$0xf] %v122
    %851 = vst [vmem:[#allocation2 + $0x48] sm:$0xf] %v123
    %852 = vst [vmem:[#allocation2 + $0x50] sm:$0xf] %v124
    %853 = vst [vmem:[#allocation2 + $0x58] sm:$0xf] %v125
    %854 = vst [vmem:[#allocation2 + $0x60] sm:$0xf] %v126
    %855 = vst [vmem:[#allocation2 + $0x68] sm:$0xf] %v127
    %856 = vst [vmem:[#allocation2 + $0x70] sm:$0xf] %v128
    %857 = vst [vmem:[#allocation2 + $0x78] sm:$0xf] %v129
    %v858 = vpack.c.bf16 %v826, %v826
    %v859 = vpack.c.bf16 %v827, %v827
    %v860 = vpack.c.bf16 %v828, %v828
    %v861 = vpack.c.bf16 %v829, %v829
    %v862 = vpack.c.bf16 %v830, %v830
    %v863 = vpack.c.bf16 %v831, %v831
    %v864 = vpack.c.bf16 %v832, %v832
    %v865 = vpack.c.bf16 %v833, %v833
    %v866 = vpack.c.bf16 %v834, %v834
    %v867 = vpack.c.bf16 %v835, %v835
    %v868 = vpack.c.bf16 %v836, %v836
    %v869 = vpack.c.bf16 %v837, %v837
    %v870 = vpack.c.bf16 %v838, %v838
    %v871 = vpack.c.bf16 %v839, %v839
    %v872 = vpack.c.bf16 %v840, %v840
    %v873 = vpack.c.bf16 %v841, %v841
    %874 = vst [vmem:[#allocation2 + $0x4] sm:$0xf] %v858
    %875 = vst [vmem:[#allocation2 + $0xc] sm:$0xf] %v859
    %876 = vst [vmem:[#allocation2 + $0x14] sm:$0xf] %v860
    %877 = vst [vmem:[#allocation2 + $0x1c] sm:$0xf] %v861
    %878 = vst [vmem:[#allocation2 + $0x24] sm:$0xf] %v862
    %879 = vst [vmem:[#allocation2 + $0x2c] sm:$0xf] %v863
    %880 = vst [vmem:[#allocation2 + $0x34] sm:$0xf] %v864
    %881 = vst [vmem:[#allocation2 + $0x3c] sm:$0xf] %v865
    %882 = vst [vmem:[#allocation2 + $0x44] sm:$0xf] %v866
    %883 = vst [vmem:[#allocation2 + $0x4c] sm:$0xf] %v867
    %884 = vst [vmem:[#allocation2 + $0x54] sm:$0xf] %v868
    %885 = vst [vmem:[#allocation2 + $0x5c] sm:$0xf] %v869
    %886 = vst [vmem:[#allocation2 + $0x64] sm:$0xf] %v870
    %887 = vst [vmem:[#allocation2 + $0x6c] sm:$0xf] %v871
    %888 = vst [vmem:[#allocation2 + $0x74] sm:$0xf] %v872
    %889 = vst [vmem:[#allocation2 + $0x7c] sm:$0xf] %v873
    %v890 = vld [vmem:[#allocation2] sm:$0xff]
    %v891 = vld [vmem:[#allocation2 + $0x8] sm:$0xff]
    %v892 = vld [vmem:[#allocation2 + $0x10] sm:$0xff]
    %v893 = vld [vmem:[#allocation2 + $0x18] sm:$0xff]
    %v894 = vld [vmem:[#allocation2 + $0x20] sm:$0xff]
    %v895 = vld [vmem:[#allocation2 + $0x28] sm:$0xff]
    %v896 = vld [vmem:[#allocation2 + $0x30] sm:$0xff]
    %v897 = vld [vmem:[#allocation2 + $0x38] sm:$0xff]
    %v898 = vld [vmem:[#allocation2 + $0x40] sm:$0xff]
    %v899 = vld [vmem:[#allocation2 + $0x48] sm:$0xff]
    %v900 = vld [vmem:[#allocation2 + $0x50] sm:$0xff]
    %v901 = vld [vmem:[#allocation2 + $0x58] sm:$0xff]
    %v902 = vld [vmem:[#allocation2 + $0x60] sm:$0xff]
    %v903 = vld [vmem:[#allocation2 + $0x68] sm:$0xff]
    %v904 = vld [vmem:[#allocation2 + $0x70] sm:$0xff]
    %v905 = vld [vmem:[#allocation2 + $0x78] sm:$0xff]
    %v906 = vld [vmem:[#allocation11] sm:$0xf]
    %v907 = vld [vmem:[#allocation11 + $0x4] sm:$0xf]
    %v908 = vld [vmem:[#allocation11 + $0x8] sm:$0xf]
    %v909 = vld [vmem:[#allocation11 + $0xc] sm:$0xf]
    %v910 = vld [vmem:[#allocation11 + $0x10] sm:$0xf]
    %v911 = vld [vmem:[#allocation11 + $0x14] sm:$0xf]
    %v912 = vld [vmem:[#allocation11 + $0x18] sm:$0xf]
    %v913 = vld [vmem:[#allocation11 + $0x1c] sm:$0xf]
    %v914 = vld [vmem:[#allocation11 + $0x20] sm:$0xf]
    %v915 = vld [vmem:[#allocation11 + $0x24] sm:$0xf]
    %v916 = vld [vmem:[#allocation11 + $0x28] sm:$0xf]
    %v917 = vld [vmem:[#allocation11 + $0x2c] sm:$0xf]
    %v918 = vld [vmem:[#allocation11 + $0x30] sm:$0xf]
    %v919 = vld [vmem:[#allocation11 + $0x34] sm:$0xf]
    %v920 = vld [vmem:[#allocation11 + $0x38] sm:$0xf]
    %v921 = vld [vmem:[#allocation11 + $0x3c] sm:$0xf]
    %v922 = vld [vmem:[#allocation11 + $0x40] sm:$0xf]
    %v923 = vld [vmem:[#allocation11 + $0x44] sm:$0xf]
    %v924 = vld [vmem:[#allocation11 + $0x48] sm:$0xf]
    %v925 = vld [vmem:[#allocation11 + $0x4c] sm:$0xf]
    %v926 = vld [vmem:[#allocation11 + $0x50] sm:$0xf]
    %v927 = vld [vmem:[#allocation11 + $0x54] sm:$0xf]
    %v928 = vld [vmem:[#allocation11 + $0x58] sm:$0xf]
    %v929 = vld [vmem:[#allocation11 + $0x5c] sm:$0xf]
    %v930 = vld [vmem:[#allocation11 + $0x60] sm:$0xf]
    %v931 = vld [vmem:[#allocation11 + $0x64] sm:$0xf]
    %v932 = vld [vmem:[#allocation11 + $0x68] sm:$0xf]
    %v933 = vld [vmem:[#allocation11 + $0x6c] sm:$0xf]
    %v934 = vld [vmem:[#allocation11 + $0x70] sm:$0xf]
    %v935 = vld [vmem:[#allocation11 + $0x74] sm:$0xf]
    %v936 = vld [vmem:[#allocation11 + $0x78] sm:$0xf]
    %v937 = vld [vmem:[#allocation11 + $0x7c] sm:$0xf]
    %v938 = vld [vmem:[%s9] sm:$0x1]
    %v940 = vperm.slane %v938, 0
    %v958 = vunpack.c.l.b16 %v890
    %v959 = vunpack.c.h.b16 %v890
    %v960 = vunpack.c.l.b16 %v891
    %v961 = vunpack.c.h.b16 %v891
    %v962 = vunpack.c.l.b16 %v892
    %v963 = vunpack.c.h.b16 %v892
    %v964 = vunpack.c.l.b16 %v893
    %v965 = vunpack.c.h.b16 %v893
    %v966 = vunpack.c.l.b16 %v894
    %v967 = vunpack.c.h.b16 %v894
    %v968 = vunpack.c.l.b16 %v895
    %v969 = vunpack.c.h.b16 %v895
    %v970 = vunpack.c.l.b16 %v896
    %v971 = vunpack.c.h.b16 %v896
    %v972 = vunpack.c.l.b16 %v897
    %v973 = vunpack.c.h.b16 %v897
    %v974 = vunpack.c.l.b16 %v898
    %v975 = vunpack.c.h.b16 %v898
    %v976 = vunpack.c.l.b16 %v899
    %v977 = vunpack.c.h.b16 %v899
    %v978 = vunpack.c.l.b16 %v900
    %v979 = vunpack.c.h.b16 %v900
    %v980 = vunpack.c.l.b16 %v901
    %v981 = vunpack.c.h.b16 %v901
    %v982 = vunpack.c.l.b16 %v902
    %v983 = vunpack.c.h.b16 %v902
    %v984 = vunpack.c.l.b16 %v903
    %v985 = vunpack.c.h.b16 %v903
    %v986 = vunpack.c.l.b16 %v904
    %v987 = vunpack.c.h.b16 %v904
    %v988 = vunpack.c.l.b16 %v905
    %v989 = vunpack.c.h.b16 %v905
    %v990 = vpack.c.b16 %v960, %v958
    %v991 = vpack.c.b16 %v961, %v959
    %v992 = vpack.c.b16 %v964, %v962
    %v993 = vpack.c.b16 %v965, %v963
    %v994 = vpack.c.b16 %v968, %v966
    %v995 = vpack.c.b16 %v969, %v967
    %v996 = vpack.c.b16 %v972, %v970
    %v997 = vpack.c.b16 %v973, %v971
    %v998 = vpack.c.b16 %v976, %v974
    %v999 = vpack.c.b16 %v977, %v975
    %v1000 = vpack.c.b16 %v980, %v978
    %v1001 = vpack.c.b16 %v981, %v979
    %v1002 = vpack.c.b16 %v984, %v982
    %v1003 = vpack.c.b16 %v985, %v983
    %v1004 = vpack.c.b16 %v988, %v986
    %v1005 = vpack.c.b16 %v989, %v987
    %v1054 = vunpack.c.l.b16 %v906
    %v1055 = vunpack.c.l.b16 %v907
    %v1056 = vunpack.c.l.b16 %v908
    %v1057 = vunpack.c.l.b16 %v909
    %v1058 = vunpack.c.l.b16 %v910
    %v1059 = vunpack.c.l.b16 %v911
    %v1060 = vunpack.c.l.b16 %v912
    %v1061 = vunpack.c.l.b16 %v913
    %v1062 = vunpack.c.l.b16 %v914
    %v1063 = vunpack.c.l.b16 %v915
    %v1064 = vunpack.c.l.b16 %v916
    %v1065 = vunpack.c.l.b16 %v917
    %v1066 = vunpack.c.l.b16 %v918
    %v1067 = vunpack.c.l.b16 %v919
    %v1068 = vunpack.c.l.b16 %v920
    %v1069 = vunpack.c.l.b16 %v921
    %v1070 = vunpack.c.l.b16 %v922
    %v1071 = vunpack.c.l.b16 %v923
    %v1072 = vunpack.c.l.b16 %v924
    %v1073 = vunpack.c.l.b16 %v925
    %v1074 = vunpack.c.l.b16 %v926
    %v1075 = vunpack.c.l.b16 %v927
    %v1076 = vunpack.c.l.b16 %v928
    %v1077 = vunpack.c.l.b16 %v929
    %v1078 = vunpack.c.l.b16 %v930
    %v1079 = vunpack.c.l.b16 %v931
    %v1080 = vunpack.c.l.b16 %v932
    %v1081 = vunpack.c.l.b16 %v933
    %v1082 = vunpack.c.l.b16 %v934
    %v1083 = vunpack.c.l.b16 %v935
    %v1084 = vunpack.c.l.b16 %v936
    %v1085 = vunpack.c.l.b16 %v937
    %v1086 = vpack.c.b16 %v1055, %v1054
    %v1087 = vpack.c.b16 %v1057, %v1056
    %v1088 = vpack.c.b16 %v1059, %v1058
    %v1089 = vpack.c.b16 %v1061, %v1060
    %v1090 = vpack.c.b16 %v1063, %v1062
    %v1091 = vpack.c.b16 %v1065, %v1064
    %v1092 = vpack.c.b16 %v1067, %v1066
    %v1093 = vpack.c.b16 %v1069, %v1068
    %v1094 = vpack.c.b16 %v1071, %v1070
    %v1095 = vpack.c.b16 %v1073, %v1072
    %v1096 = vpack.c.b16 %v1075, %v1074
    %v1097 = vpack.c.b16 %v1077, %v1076
    %v1098 = vpack.c.b16 %v1079, %v1078
    %v1099 = vpack.c.b16 %v1081, %v1080
    %v1100 = vpack.c.b16 %v1083, %v1082
    %v1101 = vpack.c.b16 %v1085, %v1084
    %1118 = vmatpush.bf16.msra.mxu0 %v1093
    %1119 = vmatpush.bf16.msra.mxu0 %v1092
    %1120 = vmatpush.bf16.msra.mxu0 %v1091
    %1121 = vmatpush.bf16.msra.mxu0 %v1090
    %1122 = vmatpush.bf16.msra.mxu0 %v1089
    %1123 = vmatpush.bf16.msra.mxu0 %v1088
    %1124 = vmatpush.bf16.msra.mxu0 %v1087
    %1125 = vmatpush.bf16.msra.mxu0 %v1086
    %1126 = vmatmul.bf16.gmra.mxu0 %v990
    %v1127 = vpop.f32.mrf.mxu0
    %v1128 = vadd.f32 %v940, %v1127
    %v1129 = vpop.f32.mrf.mxu0
    %v1130 = vadd.f32 %v940, %v1129
    %1131 = vmatmul.bf16.gmra.mxu0 %v992
    %v1132 = vpop.f32.mrf.mxu0
    %v1133 = vadd.f32 %v940, %v1132
    %v1134 = vpop.f32.mrf.mxu0
    %v1135 = vadd.f32 %v940, %v1134
    %1136 = vmatmul.bf16.gmra.mxu0 %v994
    %v1137 = vpop.f32.mrf.mxu0
    %v1138 = vadd.f32 %v940, %v1137
    %v1139 = vpop.f32.mrf.mxu0
    %v1140 = vadd.f32 %v940, %v1139
    %1141 = vmatmul.bf16.gmra.mxu0 %v996
    %v1142 = vpop.f32.mrf.mxu0
    %v1143 = vadd.f32 %v940, %v1142
    %v1144 = vpop.f32.mrf.mxu0
    %v1145 = vadd.f32 %v940, %v1144
    %1146 = vmatmul.bf16.gmra.mxu0 %v998
    %v1147 = vpop.f32.mrf.mxu0
    %v1148 = vadd.f32 %v940, %v1147
    %v1149 = vpop.f32.mrf.mxu0
    %v1150 = vadd.f32 %v940, %v1149
    %1151 = vmatmul.bf16.gmra.mxu0 %v1000
    %v1152 = vpop.f32.mrf.mxu0
    %v1153 = vadd.f32 %v940, %v1152
    %v1154 = vpop.f32.mrf.mxu0
    %v1155 = vadd.f32 %v940, %v1154
    %1156 = vmatmul.bf16.gmra.mxu0 %v1002
    %v1157 = vpop.f32.mrf.mxu0
    %v1158 = vadd.f32 %v940, %v1157
    %v1159 = vpop.f32.mrf.mxu0
    %v1160 = vadd.f32 %v940, %v1159
    %1161 = vmatmul.bf16.gmra.mxu0 %v1004
    %v1162 = vpop.f32.mrf.mxu0
    %v1163 = vadd.f32 %v940, %v1162
    %v1164 = vpop.f32.mrf.mxu0
    %v1165 = vadd.f32 %v940, %v1164
    %1166 = vdwg.mxu0
    %1167 = vmatpush.bf16.msra.mxu0 %v1101
    %1168 = vmatpush.bf16.msra.mxu0 %v1100
    %1169 = vmatpush.bf16.msra.mxu0 %v1099
    %1170 = vmatpush.bf16.msra.mxu0 %v1098
    %1171 = vmatpush.bf16.msra.mxu0 %v1097
    %1172 = vmatpush.bf16.msra.mxu0 %v1096
    %1173 = vmatpush.bf16.msra.mxu0 %v1095
    %1174 = vmatpush.bf16.msra.mxu0 %v1094
    %1175 = vmatmul.bf16.gmra.mxu0 %v991
    %v1176 = vpop.f32.mrf.mxu0
    %v1177 = vadd.f32 %v1128, %v1176
    %v1178 = vpop.f32.mrf.mxu0
    %v1179 = vadd.f32 %v1130, %v1178
    %1180 = vmatmul.bf16.gmra.mxu0 %v993
    %v1181 = vpop.f32.mrf.mxu0
    %v1182 = vadd.f32 %v1133, %v1181
    %v1183 = vpop.f32.mrf.mxu0
    %v1184 = vadd.f32 %v1135, %v1183
    %1185 = vmatmul.bf16.gmra.mxu0 %v995
    %v1186 = vpop.f32.mrf.mxu0
    %v1187 = vadd.f32 %v1138, %v1186
    %v1188 = vpop.f32.mrf.mxu0
    %v1189 = vadd.f32 %v1140, %v1188
    %1190 = vmatmul.bf16.gmra.mxu0 %v997
    %v1191 = vpop.f32.mrf.mxu0
    %v1192 = vadd.f32 %v1143, %v1191
    %v1193 = vpop.f32.mrf.mxu0
    %v1194 = vadd.f32 %v1145, %v1193
    %1195 = vmatmul.bf16.gmra.mxu0 %v999
    %v1196 = vpop.f32.mrf.mxu0
    %v1197 = vadd.f32 %v1148, %v1196
    %v1198 = vpop.f32.mrf.mxu0
    %v1199 = vadd.f32 %v1150, %v1198
    %1200 = vmatmul.bf16.gmra.mxu0 %v1001
    %v1201 = vpop.f32.mrf.mxu0
    %v1202 = vadd.f32 %v1153, %v1201
    %v1203 = vpop.f32.mrf.mxu0
    %v1204 = vadd.f32 %v1155, %v1203
    %1205 = vmatmul.bf16.gmra.mxu0 %v1003
    %v1206 = vpop.f32.mrf.mxu0
    %v1207 = vadd.f32 %v1158, %v1206
    %v1208 = vpop.f32.mrf.mxu0
    %v1209 = vadd.f32 %v1160, %v1208
    %1210 = vmatmul.bf16.gmra.mxu0 %v1005
    %v1211 = vpop.f32.mrf.mxu0
    %v1212 = vadd.f32 %v1163, %v1211
    %v1213 = vpop.f32.mrf.mxu0
    %v1214 = vadd.f32 %v1165, %v1213
    %1215 = vdwg.mxu0
    %v1216 = vmax.f32 %v1177, 0.0
    %v1217 = vmax.f32 %v1179, 0.0
    %v1218 = vmax.f32 %v1182, 0.0
    %v1219 = vmax.f32 %v1184, 0.0
    %v1220 = vmax.f32 %v1187, 0.0
    %v1221 = vmax.f32 %v1189, 0.0
    %v1222 = vmax.f32 %v1192, 0.0
    %v1223 = vmax.f32 %v1194, 0.0
    %v1224 = vmax.f32 %v1197, 0.0
    %v1225 = vmax.f32 %v1199, 0.0
    %v1226 = vmax.f32 %v1202, 0.0
    %v1227 = vmax.f32 %v1204, 0.0
    %v1228 = vmax.f32 %v1207, 0.0
    %v1229 = vmax.f32 %v1209, 0.0
    %v1230 = vmax.f32 %v1212, 0.0
    %v1231 = vmax.f32 %v1214, 0.0
    %v1232 = vpack.c.bf16 %v1216, %v1216
    %v1233 = vpack.c.bf16 %v1217, %v1217
    %v1234 = vpack.c.bf16 %v1218, %v1218
    %v1235 = vpack.c.bf16 %v1219, %v1219
    %v1236 = vpack.c.bf16 %v1220, %v1220
    %v1237 = vpack.c.bf16 %v1221, %v1221
    %v1238 = vpack.c.bf16 %v1222, %v1222
    %v1239 = vpack.c.bf16 %v1223, %v1223
    %v1240 = vpack.c.bf16 %v1224, %v1224
    %v1241 = vpack.c.bf16 %v1225, %v1225
    %v1242 = vpack.c.bf16 %v1226, %v1226
    %v1243 = vpack.c.bf16 %v1227, %v1227
    %v1244 = vpack.c.bf16 %v1228, %v1228
    %v1245 = vpack.c.bf16 %v1229, %v1229
    %v1246 = vpack.c.bf16 %v1230, %v1230
    %v1247 = vpack.c.bf16 %v1231, %v1231
    %s1248 = scalar_lea.vmem [#allocation8], 64
    %v1249 = vld [vmem:[%s1248] sm:$0xf]
    %v1250 = vld [vmem:[%s1248 + $0x4] sm:$0xf]
    %v1251 = vld [vmem:[%s1248 + $0x8] sm:$0xf]
    %v1252 = vld [vmem:[%s1248 + $0xc] sm:$0xf]
    %v1253 = vld [vmem:[%s1248 + $0x10] sm:$0xf]
    %v1254 = vld [vmem:[%s1248 + $0x14] sm:$0xf]
    %v1255 = vld [vmem:[%s1248 + $0x18] sm:$0xf]
    %v1256 = vld [vmem:[%s1248 + $0x1c] sm:$0xf]
    %v1257 = vld [vmem:[%s1248 + $0x20] sm:$0xf]
    %v1258 = vld [vmem:[%s1248 + $0x24] sm:$0xf]
    %v1259 = vld [vmem:[%s1248 + $0x28] sm:$0xf]
    %v1260 = vld [vmem:[%s1248 + $0x2c] sm:$0xf]
    %v1261 = vld [vmem:[%s1248 + $0x30] sm:$0xf]
    %v1262 = vld [vmem:[%s1248 + $0x34] sm:$0xf]
    %v1263 = vld [vmem:[%s1248 + $0x38] sm:$0xf]
    %v1264 = vld [vmem:[%s1248 + $0x3c] sm:$0xf]
    %v1281 = vunpack.c.l.b16 %v1232
    %v1282 = vunpack.c.l.b16 %v1233
    %v1283 = vunpack.c.l.b16 %v1234
    %v1284 = vunpack.c.l.b16 %v1235
    %v1285 = vunpack.c.l.b16 %v1236
    %v1286 = vunpack.c.l.b16 %v1237
    %v1287 = vunpack.c.l.b16 %v1238
    %v1288 = vunpack.c.l.b16 %v1239
    %v1289 = vunpack.c.l.b16 %v1240
    %v1290 = vunpack.c.l.b16 %v1241
    %v1291 = vunpack.c.l.b16 %v1242
    %v1292 = vunpack.c.l.b16 %v1243
    %v1293 = vunpack.c.l.b16 %v1244
    %v1294 = vunpack.c.l.b16 %v1245
    %v1295 = vunpack.c.l.b16 %v1246
    %v1296 = vunpack.c.l.b16 %v1247
    %v1297 = vpack.c.b16 %v1282, %v1281
    %v1298 = vpack.c.b16 %v1284, %v1283
    %v1299 = vpack.c.b16 %v1286, %v1285
    %v1300 = vpack.c.b16 %v1288, %v1287
    %v1301 = vpack.c.b16 %v1290, %v1289
    %v1302 = vpack.c.b16 %v1292, %v1291
    %v1303 = vpack.c.b16 %v1294, %v1293
    %v1304 = vpack.c.b16 %v1296, %v1295
    %v1329 = vunpack.c.l.b16 %v1249
    %v1330 = vunpack.c.l.b16 %v1250
    %v1331 = vunpack.c.l.b16 %v1251
    %v1332 = vunpack.c.l.b16 %v1252
    %v1333 = vunpack.c.l.b16 %v1253
    %v1334 = vunpack.c.l.b16 %v1254
    %v1335 = vunpack.c.l.b16 %v1255
    %v1336 = vunpack.c.l.b16 %v1256
    %v1337 = vunpack.c.l.b16 %v1257
    %v1338 = vunpack.c.l.b16 %v1258
    %v1339 = vunpack.c.l.b16 %v1259
    %v1340 = vunpack.c.l.b16 %v1260
    %v1341 = vunpack.c.l.b16 %v1261
    %v1342 = vunpack.c.l.b16 %v1262
    %v1343 = vunpack.c.l.b16 %v1263
    %v1344 = vunpack.c.l.b16 %v1264
    %v1345 = vpack.c.b16 %v1330, %v1329
    %v1346 = vpack.c.b16 %v1332, %v1331
    %v1347 = vpack.c.b16 %v1334, %v1333
    %v1348 = vpack.c.b16 %v1336, %v1335
    %v1349 = vpack.c.b16 %v1338, %v1337
    %v1350 = vpack.c.b16 %v1340, %v1339
    %v1351 = vpack.c.b16 %v1342, %v1341
    %v1352 = vpack.c.b16 %v1344, %v1343
    %1361 = vmatpush.bf16.msra.mxu0 %v1352
    %1362 = vmatpush.bf16.msra.mxu0 %v1351
    %1363 = vmatpush.bf16.msra.mxu0 %v1350
    %1364 = vmatpush.bf16.msra.mxu0 %v1349
    %1365 = vmatpush.bf16.msra.mxu0 %v1348
    %1366 = vmatpush.bf16.msra.mxu0 %v1347
    %1367 = vmatpush.bf16.msra.mxu0 %v1346
    %1368 = vmatpush.bf16.msra.mxu0 %v1345
    %1369 = vmatmul.bf16.gmra.mxu0 %v1297
    %v1370 = vpop.f32.mrf.mxu0
    %v1371 = vadd.f32 0.0, %v1370
    %v1372 = vpop.f32.mrf.mxu0
    %v1373 = vadd.f32 0.0, %v1372
    %1374 = vmatmul.bf16.gmra.mxu0 %v1298
    %v1375 = vpop.f32.mrf.mxu0
    %v1376 = vadd.f32 0.0, %v1375
    %v1377 = vpop.f32.mrf.mxu0
    %v1378 = vadd.f32 0.0, %v1377
    %1379 = vmatmul.bf16.gmra.mxu0 %v1299
    %v1380 = vpop.f32.mrf.mxu0
    %v1381 = vadd.f32 0.0, %v1380
    %v1382 = vpop.f32.mrf.mxu0
    %v1383 = vadd.f32 0.0, %v1382
    %1384 = vmatmul.bf16.gmra.mxu0 %v1300
    %v1385 = vpop.f32.mrf.mxu0
    %v1386 = vadd.f32 0.0, %v1385
    %v1387 = vpop.f32.mrf.mxu0
    %v1388 = vadd.f32 0.0, %v1387
    %1389 = vmatmul.bf16.gmra.mxu0 %v1301
    %v1390 = vpop.f32.mrf.mxu0
    %v1391 = vadd.f32 0.0, %v1390
    %v1392 = vpop.f32.mrf.mxu0
    %v1393 = vadd.f32 0.0, %v1392
    %1394 = vmatmul.bf16.gmra.mxu0 %v1302
    %v1395 = vpop.f32.mrf.mxu0
    %v1396 = vadd.f32 0.0, %v1395
    %v1397 = vpop.f32.mrf.mxu0
    %v1398 = vadd.f32 0.0, %v1397
    %1399 = vmatmul.bf16.gmra.mxu0 %v1303
    %v1400 = vpop.f32.mrf.mxu0
    %v1401 = vadd.f32 0.0, %v1400
    %v1402 = vpop.f32.mrf.mxu0
    %v1403 = vadd.f32 0.0, %v1402
    %1404 = vmatmul.bf16.gmra.mxu0 %v1304
    %v1405 = vpop.f32.mrf.mxu0
    %v1406 = vadd.f32 0.0, %v1405
    %v1407 = vpop.f32.mrf.mxu0
    %v1408 = vadd.f32 0.0, %v1407
    %1409 = vdwg.mxu0
    %v1410 = vpack.c.bf16 %v1373, %v1371
    %v1411 = vpack.c.bf16 %v1378, %v1376
    %v1412 = vpack.c.bf16 %v1383, %v1381
    %v1413 = vpack.c.bf16 %v1388, %v1386
    %v1414 = vpack.c.bf16 %v1393, %v1391
    %v1415 = vpack.c.bf16 %v1398, %v1396
    %v1416 = vpack.c.bf16 %v1403, %v1401
    %v1417 = vpack.c.bf16 %v1408, %v1406
    %s1418 = scalar_lea.vmem [#allocation9], 64
    %v1419 = vld [vmem:[%s1418] sm:$0xf]
    %v1420 = vld [vmem:[%s1418 + $0x4] sm:$0xf]
    %v1421 = vld [vmem:[%s1418 + $0x8] sm:$0xf]
    %v1422 = vld [vmem:[%s1418 + $0xc] sm:$0xf]
    %v1423 = vld [vmem:[%s1418 + $0x10] sm:$0xf]
    %v1424 = vld [vmem:[%s1418 + $0x14] sm:$0xf]
    %v1425 = vld [vmem:[%s1418 + $0x18] sm:$0xf]
    %v1426 = vld [vmem:[%s1418 + $0x1c] sm:$0xf]
    %v1427 = vld [vmem:[%s1418 + $0x20] sm:$0xf]
    %v1428 = vld [vmem:[%s1418 + $0x24] sm:$0xf]
    %v1429 = vld [vmem:[%s1418 + $0x28] sm:$0xf]
    %v1430 = vld [vmem:[%s1418 + $0x2c] sm:$0xf]
    %v1431 = vld [vmem:[%s1418 + $0x30] sm:$0xf]
    %v1432 = vld [vmem:[%s1418 + $0x34] sm:$0xf]
    %v1433 = vld [vmem:[%s1418 + $0x38] sm:$0xf]
    %v1434 = vld [vmem:[%s1418 + $0x3c] sm:$0xf]
    %v1451 = vunpack.c.l.b16 %v1419
    %v1452 = vunpack.c.l.b16 %v1420
    %v1453 = vunpack.c.l.b16 %v1421
    %v1454 = vunpack.c.l.b16 %v1422
    %v1455 = vunpack.c.l.b16 %v1423
    %v1456 = vunpack.c.l.b16 %v1424
    %v1457 = vunpack.c.l.b16 %v1425
    %v1458 = vunpack.c.l.b16 %v1426
    %v1459 = vunpack.c.l.b16 %v1427
    %v1460 = vunpack.c.l.b16 %v1428
    %v1461 = vunpack.c.l.b16 %v1429
    %v1462 = vunpack.c.l.b16 %v1430
    %v1463 = vunpack.c.l.b16 %v1431
    %v1464 = vunpack.c.l.b16 %v1432
    %v1465 = vunpack.c.l.b16 %v1433
    %v1466 = vunpack.c.l.b16 %v1434
    %v1467 = vpack.c.b16 %v1452, %v1451
    %v1468 = vpack.c.b16 %v1454, %v1453
    %v1469 = vpack.c.b16 %v1456, %v1455
    %v1470 = vpack.c.b16 %v1458, %v1457
    %v1471 = vpack.c.b16 %v1460, %v1459
    %v1472 = vpack.c.b16 %v1462, %v1461
    %v1473 = vpack.c.b16 %v1464, %v1463
    %v1474 = vpack.c.b16 %v1466, %v1465
    %1483 = vmatpush.bf16.msra.mxu0 %v1474
    %1484 = vmatpush.bf16.msra.mxu0 %v1473
    %1485 = vmatpush.bf16.msra.mxu0 %v1472
    %1486 = vmatpush.bf16.msra.mxu0 %v1471
    %1487 = vmatpush.bf16.msra.mxu0 %v1470
    %1488 = vmatpush.bf16.msra.mxu0 %v1469
    %1489 = vmatpush.bf16.msra.mxu0 %v1468
    %1490 = vmatpush.bf16.msra.mxu0 %v1467
    %1491 = vmatmul.bf16.gmra.mxu0 %v491
    %v1492 = vpop.f32.mrf.mxu0
    %v1493 = vadd.f32 0.0, %v1492
    %v1494 = vpop.f32.mrf.mxu0
    %v1495 = vadd.f32 0.0, %v1494
    %1496 = vmatmul.bf16.gmra.mxu0 %v492
    %v1497 = vpop.f32.mrf.mxu0
    %v1498 = vadd.f32 0.0, %v1497
    %v1499 = vpop.f32.mrf.mxu0
    %v1500 = vadd.f32 0.0, %v1499
    %1501 = vmatmul.bf16.gmra.mxu0 %v493
    %v1502 = vpop.f32.mrf.mxu0
    %v1503 = vadd.f32 0.0, %v1502
    %v1504 = vpop.f32.mrf.mxu0
    %v1505 = vadd.f32 0.0, %v1504
    %1506 = vmatmul.bf16.gmra.mxu0 %v494
    %v1507 = vpop.f32.mrf.mxu0
    %v1508 = vadd.f32 0.0, %v1507
    %v1509 = vpop.f32.mrf.mxu0
    %v1510 = vadd.f32 0.0, %v1509
    %1511 = vmatmul.bf16.gmra.mxu0 %v495
    %v1512 = vpop.f32.mrf.mxu0
    %v1513 = vadd.f32 0.0, %v1512
    %v1514 = vpop.f32.mrf.mxu0
    %v1515 = vadd.f32 0.0, %v1514
    %1516 = vmatmul.bf16.gmra.mxu0 %v496
    %v1517 = vpop.f32.mrf.mxu0
    %v1518 = vadd.f32 0.0, %v1517
    %v1519 = vpop.f32.mrf.mxu0
    %v1520 = vadd.f32 0.0, %v1519
    %1521 = vmatmul.bf16.gmra.mxu0 %v497
    %v1522 = vpop.f32.mrf.mxu0
    %v1523 = vadd.f32 0.0, %v1522
    %v1524 = vpop.f32.mrf.mxu0
    %v1525 = vadd.f32 0.0, %v1524
    %1526 = vmatmul.bf16.gmra.mxu0 %v498
    %v1527 = vpop.f32.mrf.mxu0
    %v1528 = vadd.f32 0.0, %v1527
    %v1529 = vpop.f32.mrf.mxu0
    %v1530 = vadd.f32 0.0, %v1529
    %1531 = vdwg.mxu0
    %1532 = vmatpush.bf16.msra.mxu0 %v1417
    %1533 = vmatpush.bf16.msra.mxu0 %v1416
    %1534 = vmatpush.bf16.msra.mxu0 %v1415
    %1535 = vmatpush.bf16.msra.mxu0 %v1414
    %1536 = vmatpush.bf16.msra.mxu0 %v1413
    %1537 = vmatpush.bf16.msra.mxu0 %v1412
    %1538 = vmatpush.bf16.msra.mxu0 %v1411
    %1539 = vmatpush.bf16.msra.mxu0 %v1410
    %1540 = vmatmul.bf16.gmra.mxu0 %v636
    %v1541 = vpop.f32.mrf.mxu0
    %v1542 = vadd.f32 %v1493, %v1541
    %v1543 = vpop.f32.mrf.mxu0
    %v1544 = vadd.f32 %v1495, %v1543
    %1545 = vmatmul.bf16.gmra.mxu0 %v637
    %v1546 = vpop.f32.mrf.mxu0
    %v1547 = vadd.f32 %v1498, %v1546
    %v1548 = vpop.f32.mrf.mxu0
    %v1549 = vadd.f32 %v1500, %v1548
    %1550 = vmatmul.bf16.gmra.mxu0 %v638
    %v1551 = vpop.f32.mrf.mxu0
    %v1552 = vadd.f32 %v1503, %v1551
    %v1553 = vpop.f32.mrf.mxu0
    %v1554 = vadd.f32 %v1505, %v1553
    %1555 = vmatmul.bf16.gmra.mxu0 %v639
    %v1556 = vpop.f32.mrf.mxu0
    %v1557 = vadd.f32 %v1508, %v1556
    %v1558 = vpop.f32.mrf.mxu0
    %v1559 = vadd.f32 %v1510, %v1558
    %1560 = vmatmul.bf16.gmra.mxu0 %v640
    %v1561 = vpop.f32.mrf.mxu0
    %v1562 = vadd.f32 %v1513, %v1561
    %v1563 = vpop.f32.mrf.mxu0
    %v1564 = vadd.f32 %v1515, %v1563
    %1565 = vmatmul.bf16.gmra.mxu0 %v641
    %v1566 = vpop.f32.mrf.mxu0
    %v1567 = vadd.f32 %v1518, %v1566
    %v1568 = vpop.f32.mrf.mxu0
    %v1569 = vadd.f32 %v1520, %v1568
    %1570 = vmatmul.bf16.gmra.mxu0 %v642
    %v1571 = vpop.f32.mrf.mxu0
    %v1572 = vadd.f32 %v1523, %v1571
    %v1573 = vpop.f32.mrf.mxu0
    %v1574 = vadd.f32 %v1525, %v1573
    %1575 = vmatmul.bf16.gmra.mxu0 %v643
    %v1576 = vpop.f32.mrf.mxu0
    %v1577 = vadd.f32 %v1528, %v1576
    %v1578 = vpop.f32.mrf.mxu0
    %v1579 = vadd.f32 %v1530, %v1578
    %1580 = vdwg.mxu0
    %s1581 = scalar_lea.vmem %s7, 1
    %v1582 = vld [vmem:[%s1581] sm:$0x1]
    %v1584 = vperm.slane %v1582, 0
    %v1586 = vadd.f32 %v1542, %v1584
    %v1587 = vadd.f32 %v1544, %v1584
    %v1588 = vadd.f32 %v1547, %v1584
    %v1589 = vadd.f32 %v1549, %v1584
    %v1590 = vadd.f32 %v1552, %v1584
    %v1591 = vadd.f32 %v1554, %v1584
    %v1592 = vadd.f32 %v1557, %v1584
    %v1593 = vadd.f32 %v1559, %v1584
    %v1594 = vadd.f32 %v1562, %v1584
    %v1595 = vadd.f32 %v1564, %v1584
    %v1596 = vadd.f32 %v1567, %v1584
    %v1597 = vadd.f32 %v1569, %v1584
    %v1598 = vadd.f32 %v1572, %v1584
    %v1599 = vadd.f32 %v1574, %v1584
    %v1600 = vadd.f32 %v1577, %v1584
    %v1601 = vadd.f32 %v1579, %v1584
    %v1602 = vpack.c.bf16 %v1587, %v1586
    %v1603 = vpack.c.bf16 %v1589, %v1588
    %v1604 = vpack.c.bf16 %v1591, %v1590
    %v1605 = vpack.c.bf16 %v1593, %v1592
    %v1606 = vpack.c.bf16 %v1595, %v1594
    %v1607 = vpack.c.bf16 %v1597, %v1596
    %v1608 = vpack.c.bf16 %v1599, %v1598
    %v1609 = vpack.c.bf16 %v1601, %v1600
    %1610 = vmatpush.bf16.msra.mxu0 %v1609
    %1611 = vmatpush.bf16.msra.mxu0 %v1608
    %1612 = vmatpush.bf16.msra.mxu0 %v1607
    %1613 = vmatpush.bf16.msra.mxu0 %v1606
    %1614 = vmatpush.bf16.msra.mxu0 %v1605
    %1615 = vmatpush.bf16.msra.mxu0 %v1604
    %1616 = vmatpush.bf16.msra.mxu0 %v1603
    %1617 = vmatpush.bf16.msra.mxu0 %v1602
    %1618 = vmatmul.bf16.gmra.mxu0 %v761
    %v1619 = vpop.f32.mrf.mxu0
    %v1620 = vadd.f32 0.0, %v1619
    %v1621 = vpop.f32.mrf.mxu0
    %v1622 = vadd.f32 0.0, %v1621
    %1623 = vmatmul.bf16.gmra.mxu0 %v762
    %v1624 = vpop.f32.mrf.mxu0
    %v1625 = vadd.f32 0.0, %v1624
    %v1626 = vpop.f32.mrf.mxu0
    %v1627 = vadd.f32 0.0, %v1626
    %1628 = vmatmul.bf16.gmra.mxu0 %v763
    %v1629 = vpop.f32.mrf.mxu0
    %v1630 = vadd.f32 0.0, %v1629
    %v1631 = vpop.f32.mrf.mxu0
    %v1632 = vadd.f32 0.0, %v1631
    %1633 = vmatmul.bf16.gmra.mxu0 %v764
    %v1634 = vpop.f32.mrf.mxu0
    %v1635 = vadd.f32 0.0, %v1634
    %v1636 = vpop.f32.mrf.mxu0
    %v1637 = vadd.f32 0.0, %v1636
    %1638 = vmatmul.bf16.gmra.mxu0 %v765
    %v1639 = vpop.f32.mrf.mxu0
    %v1640 = vadd.f32 0.0, %v1639
    %v1641 = vpop.f32.mrf.mxu0
    %v1642 = vadd.f32 0.0, %v1641
    %1643 = vmatmul.bf16.gmra.mxu0 %v766
    %v1644 = vpop.f32.mrf.mxu0
    %v1645 = vadd.f32 0.0, %v1644
    %v1646 = vpop.f32.mrf.mxu0
    %v1647 = vadd.f32 0.0, %v1646
    %1648 = vmatmul.bf16.gmra.mxu0 %v767
    %v1649 = vpop.f32.mrf.mxu0
    %v1650 = vadd.f32 0.0, %v1649
    %v1651 = vpop.f32.mrf.mxu0
    %v1652 = vadd.f32 0.0, %v1651
    %1653 = vmatmul.bf16.gmra.mxu0 %v768
    %v1654 = vpop.f32.mrf.mxu0
    %v1655 = vadd.f32 0.0, %v1654
    %v1656 = vpop.f32.mrf.mxu0
    %v1657 = vadd.f32 0.0, %v1656
    %1658 = vdwg.mxu0
    %v1659 = vmul.f32 %v1620, %v197
    %v1660 = vmul.f32 %v1622, %v202
    %v1661 = vmul.f32 %v1625, %v207
    %v1662 = vmul.f32 %v1627, %v212
    %v1663 = vmul.f32 %v1630, %v217
    %v1664 = vmul.f32 %v1632, %v222
    %v1665 = vmul.f32 %v1635, %v227
    %v1666 = vmul.f32 %v1637, %v232
    %v1667 = vmul.f32 %v1640, %v237
    %v1668 = vmul.f32 %v1642, %v242
    %v1669 = vmul.f32 %v1645, %v247
    %v1670 = vmul.f32 %v1647, %v252
    %v1671 = vmul.f32 %v1650, %v257
    %v1672 = vmul.f32 %v1652, %v262
    %v1673 = vmul.f32 %v1655, %v267
    %v1674 = vmul.f32 %v1657, %v272
    %1675 = vst [vmem:[#allocation2] sm:$0xf] %v1232
    %1676 = vst [vmem:[#allocation2 + $0x8] sm:$0xf] %v1233
    %1677 = vst [vmem:[#allocation2 + $0x10] sm:$0xf] %v1234
    %1678 = vst [vmem:[#allocation2 + $0x18] sm:$0xf] %v1235
    %1679 = vst [vmem:[#allocation2 + $0x20] sm:$0xf] %v1236
    %1680 = vst [vmem:[#allocation2 + $0x28] sm:$0xf] %v1237
    %1681 = vst [vmem:[#allocation2 + $0x30] sm:$0xf] %v1238
    %1682 = vst [vmem:[#allocation2 + $0x38] sm:$0xf] %v1239
    %1683 = vst [vmem:[#allocation2 + $0x40] sm:$0xf] %v1240
    %1684 = vst [vmem:[#allocation2 + $0x48] sm:$0xf] %v1241
    %1685 = vst [vmem:[#allocation2 + $0x50] sm:$0xf] %v1242
    %1686 = vst [vmem:[#allocation2 + $0x58] sm:$0xf] %v1243
    %1687 = vst [vmem:[#allocation2 + $0x60] sm:$0xf] %v1244
    %1688 = vst [vmem:[#allocation2 + $0x68] sm:$0xf] %v1245
    %1689 = vst [vmem:[#allocation2 + $0x70] sm:$0xf] %v1246
    %1690 = vst [vmem:[#allocation2 + $0x78] sm:$0xf] %v1247
    %v1691 = vpack.c.bf16 %v1659, %v1659
    %v1692 = vpack.c.bf16 %v1660, %v1660
    %v1693 = vpack.c.bf16 %v1661, %v1661
    %v1694 = vpack.c.bf16 %v1662, %v1662
    %v1695 = vpack.c.bf16 %v1663, %v1663
    %v1696 = vpack.c.bf16 %v1664, %v1664
    %v1697 = vpack.c.bf16 %v1665, %v1665
    %v1698 = vpack.c.bf16 %v1666, %v1666
    %v1699 = vpack.c.bf16 %v1667, %v1667
    %v1700 = vpack.c.bf16 %v1668, %v1668
    %v1701 = vpack.c.bf16 %v1669, %v1669
    %v1702 = vpack.c.bf16 %v1670, %v1670
    %v1703 = vpack.c.bf16 %v1671, %v1671
    %v1704 = vpack.c.bf16 %v1672, %v1672
    %v1705 = vpack.c.bf16 %v1673, %v1673
    %v1706 = vpack.c.bf16 %v1674, %v1674
    %1707 = vst [vmem:[#allocation2 + $0x4] sm:$0xf] %v1691
    %1708 = vst [vmem:[#allocation2 + $0xc] sm:$0xf] %v1692
    %1709 = vst [vmem:[#allocation2 + $0x14] sm:$0xf] %v1693
    %1710 = vst [vmem:[#allocation2 + $0x1c] sm:$0xf] %v1694
    %1711 = vst [vmem:[#allocation2 + $0x24] sm:$0xf] %v1695
    %1712 = vst [vmem:[#allocation2 + $0x2c] sm:$0xf] %v1696
    %1713 = vst [vmem:[#allocation2 + $0x34] sm:$0xf] %v1697
    %1714 = vst [vmem:[#allocation2 + $0x3c] sm:$0xf] %v1698
    %1715 = vst [vmem:[#allocation2 + $0x44] sm:$0xf] %v1699
    %1716 = vst [vmem:[#allocation2 + $0x4c] sm:$0xf] %v1700
    %1717 = vst [vmem:[#allocation2 + $0x54] sm:$0xf] %v1701
    %1718 = vst [vmem:[#allocation2 + $0x5c] sm:$0xf] %v1702
    %1719 = vst [vmem:[#allocation2 + $0x64] sm:$0xf] %v1703
    %1720 = vst [vmem:[#allocation2 + $0x6c] sm:$0xf] %v1704
    %1721 = vst [vmem:[#allocation2 + $0x74] sm:$0xf] %v1705
    %1722 = vst [vmem:[#allocation2 + $0x7c] sm:$0xf] %v1706
    %v1723 = vld [vmem:[#allocation2] sm:$0xff]
    %v1724 = vld [vmem:[#allocation2 + $0x8] sm:$0xff]
    %v1725 = vld [vmem:[#allocation2 + $0x10] sm:$0xff]
    %v1726 = vld [vmem:[#allocation2 + $0x18] sm:$0xff]
    %v1727 = vld [vmem:[#allocation2 + $0x20] sm:$0xff]
    %v1728 = vld [vmem:[#allocation2 + $0x28] sm:$0xff]
    %v1729 = vld [vmem:[#allocation2 + $0x30] sm:$0xff]
    %v1730 = vld [vmem:[#allocation2 + $0x38] sm:$0xff]
    %v1731 = vld [vmem:[#allocation2 + $0x40] sm:$0xff]
    %v1732 = vld [vmem:[#allocation2 + $0x48] sm:$0xff]
    %v1733 = vld [vmem:[#allocation2 + $0x50] sm:$0xff]
    %v1734 = vld [vmem:[#allocation2 + $0x58] sm:$0xff]
    %v1735 = vld [vmem:[#allocation2 + $0x60] sm:$0xff]
    %v1736 = vld [vmem:[#allocation2 + $0x68] sm:$0xff]
    %v1737 = vld [vmem:[#allocation2 + $0x70] sm:$0xff]
    %v1738 = vld [vmem:[#allocation2 + $0x78] sm:$0xff]
    %s1739 = scalar_lea.vmem [#allocation11], 128
    %v1740 = vld [vmem:[%s1739] sm:$0xf]
    %v1741 = vld [vmem:[%s1739 + $0x4] sm:$0xf]
    %v1742 = vld [vmem:[%s1739 + $0x8] sm:$0xf]
    %v1743 = vld [vmem:[%s1739 + $0xc] sm:$0xf]
    %v1744 = vld [vmem:[%s1739 + $0x10] sm:$0xf]
    %v1745 = vld [vmem:[%s1739 + $0x14] sm:$0xf]
    %v1746 = vld [vmem:[%s1739 + $0x18] sm:$0xf]
    %v1747 = vld [vmem:[%s1739 + $0x1c] sm:$0xf]
    %v1748 = vld [vmem:[%s1739 + $0x20] sm:$0xf]
    %v1749 = vld [vmem:[%s1739 + $0x24] sm:$0xf]
    %v1750 = vld [vmem:[%s1739 + $0x28] sm:$0xf]
    %v1751 = vld [vmem:[%s1739 + $0x2c] sm:$0xf]
    %v1752 = vld [vmem:[%s1739 + $0x30] sm:$0xf]
    %v1753 = vld [vmem:[%s1739 + $0x34] sm:$0xf]
    %v1754 = vld [vmem:[%s1739 + $0x38] sm:$0xf]
    %v1755 = vld [vmem:[%s1739 + $0x3c] sm:$0xf]
    %v1756 = vld [vmem:[%s1739 + $0x40] sm:$0xf]
    %v1757 = vld [vmem:[%s1739 + $0x44] sm:$0xf]
    %v1758 = vld [vmem:[%s1739 + $0x48] sm:$0xf]
    %v1759 = vld [vmem:[%s1739 + $0x4c] sm:$0xf]
    %v1760 = vld [vmem:[%s1739 + $0x50] sm:$0xf]
    %v1761 = vld [vmem:[%s1739 + $0x54] sm:$0xf]
    %v1762 = vld [vmem:[%s1739 + $0x58] sm:$0xf]
    %v1763 = vld [vmem:[%s1739 + $0x5c] sm:$0xf]
    %v1764 = vld [vmem:[%s1739 + $0x60] sm:$0xf]
    %v1765 = vld [vmem:[%s1739 + $0x64] sm:$0xf]
    %v1766 = vld [vmem:[%s1739 + $0x68] sm:$0xf]
    %v1767 = vld [vmem:[%s1739 + $0x6c] sm:$0xf]
    %v1768 = vld [vmem:[%s1739 + $0x70] sm:$0xf]
    %v1769 = vld [vmem:[%s1739 + $0x74] sm:$0xf]
    %v1770 = vld [vmem:[%s1739 + $0x78] sm:$0xf]
    %v1771 = vld [vmem:[%s1739 + $0x7c] sm:$0xf]
    %s1772 = scalar_lea.vmem %s9, 1
    %v1773 = vld [vmem:[%s1772] sm:$0x1]
    %v1775 = vperm.slane %v1773, 0
    %v1793 = vunpack.c.l.b16 %v1723
    %v1794 = vunpack.c.h.b16 %v1723
    %v1795 = vunpack.c.l.b16 %v1724
    %v1796 = vunpack.c.h.b16 %v1724
    %v1797 = vunpack.c.l.b16 %v1725
    %v1798 = vunpack.c.h.b16 %v1725
    %v1799 = vunpack.c.l.b16 %v1726
    %v1800 = vunpack.c.h.b16 %v1726
    %v1801 = vunpack.c.l.b16 %v1727
    %v1802 = vunpack.c.h.b16 %v1727
    %v1803 = vunpack.c.l.b16 %v1728
    %v1804 = vunpack.c.h.b16 %v1728
    %v1805 = vunpack.c.l.b16 %v1729
    %v1806 = vunpack.c.h.b16 %v1729
    %v1807 = vunpack.c.l.b16 %v1730
    %v1808 = vunpack.c.h.b16 %v1730
    %v1809 = vunpack.c.l.b16 %v1731
    %v1810 = vunpack.c.h.b16 %v1731
    %v1811 = vunpack.c.l.b16 %v1732
    %v1812 = vunpack.c.h.b16 %v1732
    %v1813 = vunpack.c.l.b16 %v1733
    %v1814 = vunpack.c.h.b16 %v1733
    %v1815 = vunpack.c.l.b16 %v1734
    %v1816 = vunpack.c.h.b16 %v1734
    %v1817 = vunpack.c.l.b16 %v1735
    %v1818 = vunpack.c.h.b16 %v1735
    %v1819 = vunpack.c.l.b16 %v1736
    %v1820 = vunpack.c.h.b16 %v1736
    %v1821 = vunpack.c.l.b16 %v1737
    %v1822 = vunpack.c.h.b16 %v1737
    %v1823 = vunpack.c.l.b16 %v1738
    %v1824 = vunpack.c.h.b16 %v1738
    %v1825 = vpack.c.b16 %v1795, %v1793
    %v1826 = vpack.c.b16 %v1796, %v1794
    %v1827 = vpack.c.b16 %v1799, %v1797
    %v1828 = vpack.c.b16 %v1800, %v1798
    %v1829 = vpack.c.b16 %v1803, %v1801
    %v1830 = vpack.c.b16 %v1804, %v1802
    %v1831 = vpack.c.b16 %v1807, %v1805
    %v1832 = vpack.c.b16 %v1808, %v1806
    %v1833 = vpack.c.b16 %v1811, %v1809
    %v1834 = vpack.c.b16 %v1812, %v1810
    %v1835 = vpack.c.b16 %v1815, %v1813
    %v1836 = vpack.c.b16 %v1816, %v1814
    %v1837 = vpack.c.b16 %v1819, %v1817
    %v1838 = vpack.c.b16 %v1820, %v1818
    %v1839 = vpack.c.b16 %v1823, %v1821
    %v1840 = vpack.c.b16 %v1824, %v1822
    %v1889 = vunpack.c.l.b16 %v1740
    %v1890 = vunpack.c.l.b16 %v1741
    %v1891 = vunpack.c.l.b16 %v1742
    %v1892 = vunpack.c.l.b16 %v1743
    %v1893 = vunpack.c.l.b16 %v1744
    %v1894 = vunpack.c.l.b16 %v1745
    %v1895 = vunpack.c.l.b16 %v1746
    %v1896 = vunpack.c.l.b16 %v1747
    %v1897 = vunpack.c.l.b16 %v1748
    %v1898 = vunpack.c.l.b16 %v1749
    %v1899 = vunpack.c.l.b16 %v1750
    %v1900 = vunpack.c.l.b16 %v1751
    %v1901 = vunpack.c.l.b16 %v1752
    %v1902 = vunpack.c.l.b16 %v1753
    %v1903 = vunpack.c.l.b16 %v1754
    %v1904 = vunpack.c.l.b16 %v1755
    %v1905 = vunpack.c.l.b16 %v1756
    %v1906 = vunpack.c.l.b16 %v1757
    %v1907 = vunpack.c.l.b16 %v1758
    %v1908 = vunpack.c.l.b16 %v1759
    %v1909 = vunpack.c.l.b16 %v1760
    %v1910 = vunpack.c.l.b16 %v1761
    %v1911 = vunpack.c.l.b16 %v1762
    %v1912 = vunpack.c.l.b16 %v1763
    %v1913 = vunpack.c.l.b16 %v1764
    %v1914 = vunpack.c.l.b16 %v1765
    %v1915 = vunpack.c.l.b16 %v1766
    %v1916 = vunpack.c.l.b16 %v1767
    %v1917 = vunpack.c.l.b16 %v1768
    %v1918 = vunpack.c.l.b16 %v1769
    %v1919 = vunpack.c.l.b16 %v1770
    %v1920 = vunpack.c.l.b16 %v1771
    %v1921 = vpack.c.b16 %v1890, %v1889
    %v1922 = vpack.c.b16 %v1892, %v1891
    %v1923 = vpack.c.b16 %v1894, %v1893
    %v1924 = vpack.c.b16 %v1896, %v1895
    %v1925 = vpack.c.b16 %v1898, %v1897
    %v1926 = vpack.c.b16 %v1900, %v1899
    %v1927 = vpack.c.b16 %v1902, %v1901
    %v1928 = vpack.c.b16 %v1904, %v1903
    %v1929 = vpack.c.b16 %v1906, %v1905
    %v1930 = vpack.c.b16 %v1908, %v1907
    %v1931 = vpack.c.b16 %v1910, %v1909
    %v1932 = vpack.c.b16 %v1912, %v1911
    %v1933 = vpack.c.b16 %v1914, %v1913
    %v1934 = vpack.c.b16 %v1916, %v1915
    %v1935 = vpack.c.b16 %v1918, %v1917
    %v1936 = vpack.c.b16 %v1920, %v1919
    %1953 = vmatpush.bf16.msra.mxu0 %v1928
    %1954 = vmatpush.bf16.msra.mxu0 %v1927
    %1955 = vmatpush.bf16.msra.mxu0 %v1926
    %1956 = vmatpush.bf16.msra.mxu0 %v1925
    %1957 = vmatpush.bf16.msra.mxu0 %v1924
    %1958 = vmatpush.bf16.msra.mxu0 %v1923
    %1959 = vmatpush.bf16.msra.mxu0 %v1922
    %1960 = vmatpush.bf16.msra.mxu0 %v1921
    %1961 = vmatmul.bf16.gmra.mxu0 %v1825
    %v1962 = vpop.f32.mrf.mxu0
    %v1963 = vadd.f32 %v1775, %v1962
    %v1964 = vpop.f32.mrf.mxu0
    %v1965 = vadd.f32 %v1775, %v1964
    %1966 = vmatmul.bf16.gmra.mxu0 %v1827
    %v1967 = vpop.f32.mrf.mxu0
    %v1968 = vadd.f32 %v1775, %v1967
    %v1969 = vpop.f32.mrf.mxu0
    %v1970 = vadd.f32 %v1775, %v1969
    %1971 = vmatmul.bf16.gmra.mxu0 %v1829
    %v1972 = vpop.f32.mrf.mxu0
    %v1973 = vadd.f32 %v1775, %v1972
    %v1974 = vpop.f32.mrf.mxu0
    %v1975 = vadd.f32 %v1775, %v1974
    %1976 = vmatmul.bf16.gmra.mxu0 %v1831
    %v1977 = vpop.f32.mrf.mxu0
    %v1978 = vadd.f32 %v1775, %v1977
    %v1979 = vpop.f32.mrf.mxu0
    %v1980 = vadd.f32 %v1775, %v1979
    %1981 = vmatmul.bf16.gmra.mxu0 %v1833
    %v1982 = vpop.f32.mrf.mxu0
    %v1983 = vadd.f32 %v1775, %v1982
    %v1984 = vpop.f32.mrf.mxu0
    %v1985 = vadd.f32 %v1775, %v1984
    %1986 = vmatmul.bf16.gmra.mxu0 %v1835
    %v1987 = vpop.f32.mrf.mxu0
    %v1988 = vadd.f32 %v1775, %v1987
    %v1989 = vpop.f32.mrf.mxu0
    %v1990 = vadd.f32 %v1775, %v1989
    %1991 = vmatmul.bf16.gmra.mxu0 %v1837
    %v1992 = vpop.f32.mrf.mxu0
    %v1993 = vadd.f32 %v1775, %v1992
    %v1994 = vpop.f32.mrf.mxu0
    %v1995 = vadd.f32 %v1775, %v1994
    %1996 = vmatmul.bf16.gmra.mxu0 %v1839
    %v1997 = vpop.f32.mrf.mxu0
    %v1998 = vadd.f32 %v1775, %v1997
    %v1999 = vpop.f32.mrf.mxu0
    %v2000 = vadd.f32 %v1775, %v1999
    %2001 = vdwg.mxu0
    %2002 = vmatpush.bf16.msra.mxu0 %v1936
    %2003 = vmatpush.bf16.msra.mxu0 %v1935
    %2004 = vmatpush.bf16.msra.mxu0 %v1934
    %2005 = vmatpush.bf16.msra.mxu0 %v1933
    %2006 = vmatpush.bf16.msra.mxu0 %v1932
    %2007 = vmatpush.bf16.msra.mxu0 %v1931
    %2008 = vmatpush.bf16.msra.mxu0 %v1930
    %2009 = vmatpush.bf16.msra.mxu0 %v1929
    %2010 = vmatmul.bf16.gmra.mxu0 %v1826
    %v2011 = vpop.f32.mrf.mxu0
    %v2012 = vadd.f32 %v1963, %v2011
    %v2013 = vpop.f32.mrf.mxu0
    %v2014 = vadd.f32 %v1965, %v2013
    %2015 = vmatmul.bf16.gmra.mxu0 %v1828
    %v2016 = vpop.f32.mrf.mxu0
    %v2017 = vadd.f32 %v1968, %v2016
    %v2018 = vpop.f32.mrf.mxu0
    %v2019 = vadd.f32 %v1970, %v2018
    %2020 = vmatmul.bf16.gmra.mxu0 %v1830
    %v2021 = vpop.f32.mrf.mxu0
    %v2022 = vadd.f32 %v1973, %v2021
    %v2023 = vpop.f32.mrf.mxu0
    %v2024 = vadd.f32 %v1975, %v2023
    %2025 = vmatmul.bf16.gmra.mxu0 %v1832
    %v2026 = vpop.f32.mrf.mxu0
    %v2027 = vadd.f32 %v1978, %v2026
    %v2028 = vpop.f32.mrf.mxu0
    %v2029 = vadd.f32 %v1980, %v2028
    %2030 = vmatmul.bf16.gmra.mxu0 %v1834
    %v2031 = vpop.f32.mrf.mxu0
    %v2032 = vadd.f32 %v1983, %v2031
    %v2033 = vpop.f32.mrf.mxu0
    %v2034 = vadd.f32 %v1985, %v2033
    %2035 = vmatmul.bf16.gmra.mxu0 %v1836
    %v2036 = vpop.f32.mrf.mxu0
    %v2037 = vadd.f32 %v1988, %v2036
    %v2038 = vpop.f32.mrf.mxu0
    %v2039 = vadd.f32 %v1990, %v2038
    %2040 = vmatmul.bf16.gmra.mxu0 %v1838
    %v2041 = vpop.f32.mrf.mxu0
    %v2042 = vadd.f32 %v1993, %v2041
    %v2043 = vpop.f32.mrf.mxu0
    %v2044 = vadd.f32 %v1995, %v2043
    %2045 = vmatmul.bf16.gmra.mxu0 %v1840
    %v2046 = vpop.f32.mrf.mxu0
    %v2047 = vadd.f32 %v1998, %v2046
    %v2048 = vpop.f32.mrf.mxu0
    %v2049 = vadd.f32 %v2000, %v2048
    %2050 = vdwg.mxu0
    %v2051 = vmax.f32 %v2012, 0.0
    %v2052 = vmax.f32 %v2014, 0.0
    %v2053 = vmax.f32 %v2017, 0.0
    %v2054 = vmax.f32 %v2019, 0.0
    %v2055 = vmax.f32 %v2022, 0.0
    %v2056 = vmax.f32 %v2024, 0.0
    %v2057 = vmax.f32 %v2027, 0.0
    %v2058 = vmax.f32 %v2029, 0.0
    %v2059 = vmax.f32 %v2032, 0.0
    %v2060 = vmax.f32 %v2034, 0.0
    %v2061 = vmax.f32 %v2037, 0.0
    %v2062 = vmax.f32 %v2039, 0.0
    %v2063 = vmax.f32 %v2042, 0.0
    %v2064 = vmax.f32 %v2044, 0.0
    %v2065 = vmax.f32 %v2047, 0.0
    %v2066 = vmax.f32 %v2049, 0.0
    %v2067 = vpack.c.bf16 %v2051, %v2051
    %v2068 = vpack.c.bf16 %v2052, %v2052
    %v2069 = vpack.c.bf16 %v2053, %v2053
    %v2070 = vpack.c.bf16 %v2054, %v2054
    %v2071 = vpack.c.bf16 %v2055, %v2055
    %v2072 = vpack.c.bf16 %v2056, %v2056
    %v2073 = vpack.c.bf16 %v2057, %v2057
    %v2074 = vpack.c.bf16 %v2058, %v2058
    %v2075 = vpack.c.bf16 %v2059, %v2059
    %v2076 = vpack.c.bf16 %v2060, %v2060
    %v2077 = vpack.c.bf16 %v2061, %v2061
    %v2078 = vpack.c.bf16 %v2062, %v2062
    %v2079 = vpack.c.bf16 %v2063, %v2063
    %v2080 = vpack.c.bf16 %v2064, %v2064
    %v2081 = vpack.c.bf16 %v2065, %v2065
    %v2082 = vpack.c.bf16 %v2066, %v2066
    %s2083 = scalar_lea.vmem [#allocation8], 128
    %v2084 = vld [vmem:[%s2083] sm:$0xf]
    %v2085 = vld [vmem:[%s2083 + $0x4] sm:$0xf]
    %v2086 = vld [vmem:[%s2083 + $0x8] sm:$0xf]
    %v2087 = vld [vmem:[%s2083 + $0xc] sm:$0xf]
    %v2088 = vld [vmem:[%s2083 + $0x10] sm:$0xf]
    %v2089 = vld [vmem:[%s2083 + $0x14] sm:$0xf]
    %v2090 = vld [vmem:[%s2083 + $0x18] sm:$0xf]
    %v2091 = vld [vmem:[%s2083 + $0x1c] sm:$0xf]
    %v2092 = vld [vmem:[%s2083 + $0x20] sm:$0xf]
    %v2093 = vld [vmem:[%s2083 + $0x24] sm:$0xf]
    %v2094 = vld [vmem:[%s2083 + $0x28] sm:$0xf]
    %v2095 = vld [vmem:[%s2083 + $0x2c] sm:$0xf]
    %v2096 = vld [vmem:[%s2083 + $0x30] sm:$0xf]
    %v2097 = vld [vmem:[%s2083 + $0x34] sm:$0xf]
    %v2098 = vld [vmem:[%s2083 + $0x38] sm:$0xf]
    %v2099 = vld [vmem:[%s2083 + $0x3c] sm:$0xf]
    %v2116 = vunpack.c.l.b16 %v2067
    %v2117 = vunpack.c.l.b16 %v2068
    %v2118 = vunpack.c.l.b16 %v2069
    %v2119 = vunpack.c.l.b16 %v2070
    %v2120 = vunpack.c.l.b16 %v2071
    %v2121 = vunpack.c.l.b16 %v2072
    %v2122 = vunpack.c.l.b16 %v2073
    %v2123 = vunpack.c.l.b16 %v2074
    %v2124 = vunpack.c.l.b16 %v2075
    %v2125 = vunpack.c.l.b16 %v2076
    %v2126 = vunpack.c.l.b16 %v2077
    %v2127 = vunpack.c.l.b16 %v2078
    %v2128 = vunpack.c.l.b16 %v2079
    %v2129 = vunpack.c.l.b16 %v2080
    %v2130 = vunpack.c.l.b16 %v2081
    %v2131 = vunpack.c.l.b16 %v2082
    %v2132 = vpack.c.b16 %v2117, %v2116
    %v2133 = vpack.c.b16 %v2119, %v2118
    %v2134 = vpack.c.b16 %v2121, %v2120
    %v2135 = vpack.c.b16 %v2123, %v2122
    %v2136 = vpack.c.b16 %v2125, %v2124
    %v2137 = vpack.c.b16 %v2127, %v2126
    %v2138 = vpack.c.b16 %v2129, %v2128
    %v2139 = vpack.c.b16 %v2131, %v2130
    %v2164 = vunpack.c.l.b16 %v2084
    %v2165 = vunpack.c.l.b16 %v2085
    %v2166 = vunpack.c.l.b16 %v2086
    %v2167 = vunpack.c.l.b16 %v2087
    %v2168 = vunpack.c.l.b16 %v2088
    %v2169 = vunpack.c.l.b16 %v2089
    %v2170 = vunpack.c.l.b16 %v2090
    %v2171 = vunpack.c.l.b16 %v2091
    %v2172 = vunpack.c.l.b16 %v2092
    %v2173 = vunpack.c.l.b16 %v2093
    %v2174 = vunpack.c.l.b16 %v2094
    %v2175 = vunpack.c.l.b16 %v2095
    %v2176 = vunpack.c.l.b16 %v2096
    %v2177 = vunpack.c.l.b16 %v2097
    %v2178 = vunpack.c.l.b16 %v2098
    %v2179 = vunpack.c.l.b16 %v2099
    %v2180 = vpack.c.b16 %v2165, %v2164
    %v2181 = vpack.c.b16 %v2167, %v2166
    %v2182 = vpack.c.b16 %v2169, %v2168
    %v2183 = vpack.c.b16 %v2171, %v2170
    %v2184 = vpack.c.b16 %v2173, %v2172
    %v2185 = vpack.c.b16 %v2175, %v2174
    %v2186 = vpack.c.b16 %v2177, %v2176
    %v2187 = vpack.c.b16 %v2179, %v2178
    %2196 = vmatpush.bf16.msra.mxu0 %v2187
    %2197 = vmatpush.bf16.msra.mxu0 %v2186
    %2198 = vmatpush.bf16.msra.mxu0 %v2185
    %2199 = vmatpush.bf16.msra.mxu0 %v2184
    %2200 = vmatpush.bf16.msra.mxu0 %v2183
    %2201 = vmatpush.bf16.msra.mxu0 %v2182
    %2202 = vmatpush.bf16.msra.mxu0 %v2181
    %2203 = vmatpush.bf16.msra.mxu0 %v2180
    %2204 = vmatmul.bf16.gmra.mxu0 %v2132
    %v2205 = vpop.f32.mrf.mxu0
    %v2206 = vadd.f32 0.0, %v2205
    %v2207 = vpop.f32.mrf.mxu0
    %v2208 = vadd.f32 0.0, %v2207
    %2209 = vmatmul.bf16.gmra.mxu0 %v2133
    %v2210 = vpop.f32.mrf.mxu0
    %v2211 = vadd.f32 0.0, %v2210
    %v2212 = vpop.f32.mrf.mxu0
    %v2213 = vadd.f32 0.0, %v2212
    %2214 = vmatmul.bf16.gmra.mxu0 %v2134
    %v2215 = vpop.f32.mrf.mxu0
    %v2216 = vadd.f32 0.0, %v2215
    %v2217 = vpop.f32.mrf.mxu0
    %v2218 = vadd.f32 0.0, %v2217
    %2219 = vmatmul.bf16.gmra.mxu0 %v2135
    %v2220 = vpop.f32.mrf.mxu0
    %v2221 = vadd.f32 0.0, %v2220
    %v2222 = vpop.f32.mrf.mxu0
    %v2223 = vadd.f32 0.0, %v2222
    %2224 = vmatmul.bf16.gmra.mxu0 %v2136
    %v2225 = vpop.f32.mrf.mxu0
    %v2226 = vadd.f32 0.0, %v2225
    %v2227 = vpop.f32.mrf.mxu0
    %v2228 = vadd.f32 0.0, %v2227
    %2229 = vmatmul.bf16.gmra.mxu0 %v2137
    %v2230 = vpop.f32.mrf.mxu0
    %v2231 = vadd.f32 0.0, %v2230
    %v2232 = vpop.f32.mrf.mxu0
    %v2233 = vadd.f32 0.0, %v2232
    %2234 = vmatmul.bf16.gmra.mxu0 %v2138
    %v2235 = vpop.f32.mrf.mxu0
    %v2236 = vadd.f32 0.0, %v2235
    %v2237 = vpop.f32.mrf.mxu0
    %v2238 = vadd.f32 0.0, %v2237
    %2239 = vmatmul.bf16.gmra.mxu0 %v2139
    %v2240 = vpop.f32.mrf.mxu0
    %v2241 = vadd.f32 0.0, %v2240
    %v2242 = vpop.f32.mrf.mxu0
    %v2243 = vadd.f32 0.0, %v2242
    %2244 = vdwg.mxu0
    %v2245 = vpack.c.bf16 %v2208, %v2206
    %v2246 = vpack.c.bf16 %v2213, %v2211
    %v2247 = vpack.c.bf16 %v2218, %v2216
    %v2248 = vpack.c.bf16 %v2223, %v2221
    %v2249 = vpack.c.bf16 %v2228, %v2226
    %v2250 = vpack.c.bf16 %v2233, %v2231
    %v2251 = vpack.c.bf16 %v2238, %v2236
    %v2252 = vpack.c.bf16 %v2243, %v2241
    %s2253 = scalar_lea.vmem [#allocation9], 128
    %v2254 = vld [vmem:[%s2253] sm:$0xf]
    %v2255 = vld [vmem:[%s2253 + $0x4] sm:$0xf]
    %v2256 = vld [vmem:[%s2253 + $0x8] sm:$0xf]
    %v2257 = vld [vmem:[%s2253 + $0xc] sm:$0xf]
    %v2258 = vld [vmem:[%s2253 + $0x10] sm:$0xf]
    %v2259 = vld [vmem:[%s2253 + $0x14] sm:$0xf]
    %v2260 = vld [vmem:[%s2253 + $0x18] sm:$0xf]
    %v2261 = vld [vmem:[%s2253 + $0x1c] sm:$0xf]
    %v2262 = vld [vmem:[%s2253 + $0x20] sm:$0xf]
    %v2263 = vld [vmem:[%s2253 + $0x24] sm:$0xf]
    %v2264 = vld [vmem:[%s2253 + $0x28] sm:$0xf]
    %v2265 = vld [vmem:[%s2253 + $0x2c] sm:$0xf]
    %v2266 = vld [vmem:[%s2253 + $0x30] sm:$0xf]
    %v2267 = vld [vmem:[%s2253 + $0x34] sm:$0xf]
    %v2268 = vld [vmem:[%s2253 + $0x38] sm:$0xf]
    %v2269 = vld [vmem:[%s2253 + $0x3c] sm:$0xf]
    %v2286 = vunpack.c.l.b16 %v2254
    %v2287 = vunpack.c.l.b16 %v2255
    %v2288 = vunpack.c.l.b16 %v2256
    %v2289 = vunpack.c.l.b16 %v2257
    %v2290 = vunpack.c.l.b16 %v2258
    %v2291 = vunpack.c.l.b16 %v2259
    %v2292 = vunpack.c.l.b16 %v2260
    %v2293 = vunpack.c.l.b16 %v2261
    %v2294 = vunpack.c.l.b16 %v2262
    %v2295 = vunpack.c.l.b16 %v2263
    %v2296 = vunpack.c.l.b16 %v2264
    %v2297 = vunpack.c.l.b16 %v2265
    %v2298 = vunpack.c.l.b16 %v2266
    %v2299 = vunpack.c.l.b16 %v2267
    %v2300 = vunpack.c.l.b16 %v2268
    %v2301 = vunpack.c.l.b16 %v2269
    %v2302 = vpack.c.b16 %v2287, %v2286
    %v2303 = vpack.c.b16 %v2289, %v2288
    %v2304 = vpack.c.b16 %v2291, %v2290
    %v2305 = vpack.c.b16 %v2293, %v2292
    %v2306 = vpack.c.b16 %v2295, %v2294
    %v2307 = vpack.c.b16 %v2297, %v2296
    %v2308 = vpack.c.b16 %v2299, %v2298
    %v2309 = vpack.c.b16 %v2301, %v2300
    %2318 = vmatpush.bf16.msra.mxu0 %v2309
    %2319 = vmatpush.bf16.msra.mxu0 %v2308
    %2320 = vmatpush.bf16.msra.mxu0 %v2307
    %2321 = vmatpush.bf16.msra.mxu0 %v2306
    %2322 = vmatpush.bf16.msra.mxu0 %v2305
    %2323 = vmatpush.bf16.msra.mxu0 %v2304
    %2324 = vmatpush.bf16.msra.mxu0 %v2303
    %2325 = vmatpush.bf16.msra.mxu0 %v2302
    %2326 = vmatmul.bf16.gmra.mxu0 %v491
    %v2327 = vpop.f32.mrf.mxu0
    %v2328 = vadd.f32 0.0, %v2327
    %v2329 = vpop.f32.mrf.mxu0
    %v2330 = vadd.f32 0.0, %v2329
    %2331 = vmatmul.bf16.gmra.mxu0 %v492
    %v2332 = vpop.f32.mrf.mxu0
    %v2333 = vadd.f32 0.0, %v2332
    %v2334 = vpop.f32.mrf.mxu0
    %v2335 = vadd.f32 0.0, %v2334
    %2336 = vmatmul.bf16.gmra.mxu0 %v493
    %v2337 = vpop.f32.mrf.mxu0
    %v2338 = vadd.f32 0.0, %v2337
    %v2339 = vpop.f32.mrf.mxu0
    %v2340 = vadd.f32 0.0, %v2339
    %2341 = vmatmul.bf16.gmra.mxu0 %v494
    %v2342 = vpop.f32.mrf.mxu0
    %v2343 = vadd.f32 0.0, %v2342
    %v2344 = vpop.f32.mrf.mxu0
    %v2345 = vadd.f32 0.0, %v2344
    %2346 = vmatmul.bf16.gmra.mxu0 %v495
    %v2347 = vpop.f32.mrf.mxu0
    %v2348 = vadd.f32 0.0, %v2347
    %v2349 = vpop.f32.mrf.mxu0
    %v2350 = vadd.f32 0.0, %v2349
    %2351 = vmatmul.bf16.gmra.mxu0 %v496
    %v2352 = vpop.f32.mrf.mxu0
    %v2353 = vadd.f32 0.0, %v2352
    %v2354 = vpop.f32.mrf.mxu0
    %v2355 = vadd.f32 0.0, %v2354
    %2356 = vmatmul.bf16.gmra.mxu0 %v497
    %v2357 = vpop.f32.mrf.mxu0
    %v2358 = vadd.f32 0.0, %v2357
    %v2359 = vpop.f32.mrf.mxu0
    %v2360 = vadd.f32 0.0, %v2359
    %2361 = vmatmul.bf16.gmra.mxu0 %v498
    %v2362 = vpop.f32.mrf.mxu0
    %v2363 = vadd.f32 0.0, %v2362
    %v2364 = vpop.f32.mrf.mxu0
    %v2365 = vadd.f32 0.0, %v2364
    %2366 = vdwg.mxu0
    %2367 = vmatpush.bf16.msra.mxu0 %v2252
    %2368 = vmatpush.bf16.msra.mxu0 %v2251
    %2369 = vmatpush.bf16.msra.mxu0 %v2250
    %2370 = vmatpush.bf16.msra.mxu0 %v2249
    %2371 = vmatpush.bf16.msra.mxu0 %v2248
    %2372 = vmatpush.bf16.msra.mxu0 %v2247
    %2373 = vmatpush.bf16.msra.mxu0 %v2246
    %2374 = vmatpush.bf16.msra.mxu0 %v2245
    %2375 = vmatmul.bf16.gmra.mxu0 %v636
    %v2376 = vpop.f32.mrf.mxu0
    %v2377 = vadd.f32 %v2328, %v2376
    %v2378 = vpop.f32.mrf.mxu0
    %v2379 = vadd.f32 %v2330, %v2378
    %2380 = vmatmul.bf16.gmra.mxu0 %v637
    %v2381 = vpop.f32.mrf.mxu0
    %v2382 = vadd.f32 %v2333, %v2381
    %v2383 = vpop.f32.mrf.mxu0
    %v2384 = vadd.f32 %v2335, %v2383
    %2385 = vmatmul.bf16.gmra.mxu0 %v638
    %v2386 = vpop.f32.mrf.mxu0
    %v2387 = vadd.f32 %v2338, %v2386
    %v2388 = vpop.f32.mrf.mxu0
    %v2389 = vadd.f32 %v2340, %v2388
    %2390 = vmatmul.bf16.gmra.mxu0 %v639
    %v2391 = vpop.f32.mrf.mxu0
    %v2392 = vadd.f32 %v2343, %v2391
    %v2393 = vpop.f32.mrf.mxu0
    %v2394 = vadd.f32 %v2345, %v2393
    %2395 = vmatmul.bf16.gmra.mxu0 %v640
    %v2396 = vpop.f32.mrf.mxu0
    %v2397 = vadd.f32 %v2348, %v2396
    %v2398 = vpop.f32.mrf.mxu0
    %v2399 = vadd.f32 %v2350, %v2398
    %2400 = vmatmul.bf16.gmra.mxu0 %v641
    %v2401 = vpop.f32.mrf.mxu0
    %v2402 = vadd.f32 %v2353, %v2401
    %v2403 = vpop.f32.mrf.mxu0
    %v2404 = vadd.f32 %v2355, %v2403
    %2405 = vmatmul.bf16.gmra.mxu0 %v642
    %v2406 = vpop.f32.mrf.mxu0
    %v2407 = vadd.f32 %v2358, %v2406
    %v2408 = vpop.f32.mrf.mxu0
    %v2409 = vadd.f32 %v2360, %v2408
    %2410 = vmatmul.bf16.gmra.mxu0 %v643
    %v2411 = vpop.f32.mrf.mxu0
    %v2412 = vadd.f32 %v2363, %v2411
    %v2413 = vpop.f32.mrf.mxu0
    %v2414 = vadd.f32 %v2365, %v2413
    %2415 = vdwg.mxu0
    %s2416 = scalar_lea.vmem %s7, 2
    %v2417 = vld [vmem:[%s2416] sm:$0x1]
    %v2419 = vperm.slane %v2417, 0
    %v2421 = vadd.f32 %v2377, %v2419
    %v2422 = vadd.f32 %v2379, %v2419
    %v2423 = vadd.f32 %v2382, %v2419
    %v2424 = vadd.f32 %v2384, %v2419
    %v2425 = vadd.f32 %v2387, %v2419
    %v2426 = vadd.f32 %v2389, %v2419
    %v2427 = vadd.f32 %v2392, %v2419
    %v2428 = vadd.f32 %v2394, %v2419
    %v2429 = vadd.f32 %v2397, %v2419
    %v2430 = vadd.f32 %v2399, %v2419
    %v2431 = vadd.f32 %v2402, %v2419
    %v2432 = vadd.f32 %v2404, %v2419
    %v2433 = vadd.f32 %v2407, %v2419
    %v2434 = vadd.f32 %v2409, %v2419
    %v2435 = vadd.f32 %v2412, %v2419
    %v2436 = vadd.f32 %v2414, %v2419
    %v2437 = vpack.c.bf16 %v2422, %v2421
    %v2438 = vpack.c.bf16 %v2424, %v2423
    %v2439 = vpack.c.bf16 %v2426, %v2425
    %v2440 = vpack.c.bf16 %v2428, %v2427
    %v2441 = vpack.c.bf16 %v2430, %v2429
    %v2442 = vpack.c.bf16 %v2432, %v2431
    %v2443 = vpack.c.bf16 %v2434, %v2433
    %v2444 = vpack.c.bf16 %v2436, %v2435
    %2445 = vmatpush.bf16.msra.mxu0 %v2444
    %2446 = vmatpush.bf16.msra.mxu0 %v2443
    %2447 = vmatpush.bf16.msra.mxu0 %v2442
    %2448 = vmatpush.bf16.msra.mxu0 %v2441
    %2449 = vmatpush.bf16.msra.mxu0 %v2440
    %2450 = vmatpush.bf16.msra.mxu0 %v2439
    %2451 = vmatpush.bf16.msra.mxu0 %v2438
    %2452 = vmatpush.bf16.msra.mxu0 %v2437
    %2453 = vmatmul.bf16.gmra.mxu0 %v761
    %v2454 = vpop.f32.mrf.mxu0
    %v2455 = vadd.f32 0.0, %v2454
    %v2456 = vpop.f32.mrf.mxu0
    %v2457 = vadd.f32 0.0, %v2456
    %2458 = vmatmul.bf16.gmra.mxu0 %v762
    %v2459 = vpop.f32.mrf.mxu0
    %v2460 = vadd.f32 0.0, %v2459
    %v2461 = vpop.f32.mrf.mxu0
    %v2462 = vadd.f32 0.0, %v2461
    %2463 = vmatmul.bf16.gmra.mxu0 %v763
    %v2464 = vpop.f32.mrf.mxu0
    %v2465 = vadd.f32 0.0, %v2464
    %v2466 = vpop.f32.mrf.mxu0
    %v2467 = vadd.f32 0.0, %v2466
    %2468 = vmatmul.bf16.gmra.mxu0 %v764
    %v2469 = vpop.f32.mrf.mxu0
    %v2470 = vadd.f32 0.0, %v2469
    %v2471 = vpop.f32.mrf.mxu0
    %v2472 = vadd.f32 0.0, %v2471
    %2473 = vmatmul.bf16.gmra.mxu0 %v765
    %v2474 = vpop.f32.mrf.mxu0
    %v2475 = vadd.f32 0.0, %v2474
    %v2476 = vpop.f32.mrf.mxu0
    %v2477 = vadd.f32 0.0, %v2476
    %2478 = vmatmul.bf16.gmra.mxu0 %v766
    %v2479 = vpop.f32.mrf.mxu0
    %v2480 = vadd.f32 0.0, %v2479
    %v2481 = vpop.f32.mrf.mxu0
    %v2482 = vadd.f32 0.0, %v2481
    %2483 = vmatmul.bf16.gmra.mxu0 %v767
    %v2484 = vpop.f32.mrf.mxu0
    %v2485 = vadd.f32 0.0, %v2484
    %v2486 = vpop.f32.mrf.mxu0
    %v2487 = vadd.f32 0.0, %v2486
    %2488 = vmatmul.bf16.gmra.mxu0 %v768
    %v2489 = vpop.f32.mrf.mxu0
    %v2490 = vadd.f32 0.0, %v2489
    %v2491 = vpop.f32.mrf.mxu0
    %v2492 = vadd.f32 0.0, %v2491
    %2493 = vdwg.mxu0
    %v2494 = vmul.f32 %v2455, %v197
    %v2495 = vmul.f32 %v2457, %v202
    %v2496 = vmul.f32 %v2460, %v207
    %v2497 = vmul.f32 %v2462, %v212
    %v2498 = vmul.f32 %v2465, %v217
    %v2499 = vmul.f32 %v2467, %v222
    %v2500 = vmul.f32 %v2470, %v227
    %v2501 = vmul.f32 %v2472, %v232
    %v2502 = vmul.f32 %v2475, %v237
    %v2503 = vmul.f32 %v2477, %v242
    %v2504 = vmul.f32 %v2480, %v247
    %v2505 = vmul.f32 %v2482, %v252
    %v2506 = vmul.f32 %v2485, %v257
    %v2507 = vmul.f32 %v2487, %v262
    %v2508 = vmul.f32 %v2490, %v267
    %v2509 = vmul.f32 %v2492, %v272
    %2510 = vst [vmem:[#allocation2] sm:$0xf] %v2067
    %2511 = vst [vmem:[#allocation2 + $0x8] sm:$0xf] %v2068
    %2512 = vst [vmem:[#allocation2 + $0x10] sm:$0xf] %v2069
    %2513 = vst [vmem:[#allocation2 + $0x18] sm:$0xf] %v2070
    %2514 = vst [vmem:[#allocation2 + $0x20] sm:$0xf] %v2071
    %2515 = vst [vmem:[#allocation2 + $0x28] sm:$0xf] %v2072
    %2516 = vst [vmem:[#allocation2 + $0x30] sm:$0xf] %v2073
    %2517 = vst [vmem:[#allocation2 + $0x38] sm:$0xf] %v2074
    %2518 = vst [vmem:[#allocation2 + $0x40] sm:$0xf] %v2075
    %2519 = vst [vmem:[#allocation2 + $0x48] sm:$0xf] %v2076
    %2520 = vst [vmem:[#allocation2 + $0x50] sm:$0xf] %v2077
    %2521 = vst [vmem:[#allocation2 + $0x58] sm:$0xf] %v2078
    %2522 = vst [vmem:[#allocation2 + $0x60] sm:$0xf] %v2079
    %2523 = vst [vmem:[#allocation2 + $0x68] sm:$0xf] %v2080
    %2524 = vst [vmem:[#allocation2 + $0x70] sm:$0xf] %v2081
    %2525 = vst [vmem:[#allocation2 + $0x78] sm:$0xf] %v2082
    %v2526 = vpack.c.bf16 %v2494, %v2494
    %v2527 = vpack.c.bf16 %v2495, %v2495
    %v2528 = vpack.c.bf16 %v2496, %v2496
    %v2529 = vpack.c.bf16 %v2497, %v2497
    %v2530 = vpack.c.bf16 %v2498, %v2498
    %v2531 = vpack.c.bf16 %v2499, %v2499
    %v2532 = vpack.c.bf16 %v2500, %v2500
    %v2533 = vpack.c.bf16 %v2501, %v2501
    %v2534 = vpack.c.bf16 %v2502, %v2502
    %v2535 = vpack.c.bf16 %v2503, %v2503
    %v2536 = vpack.c.bf16 %v2504, %v2504
    %v2537 = vpack.c.bf16 %v2505, %v2505
    %v2538 = vpack.c.bf16 %v2506, %v2506
    %v2539 = vpack.c.bf16 %v2507, %v2507
    %v2540 = vpack.c.bf16 %v2508, %v2508
    %v2541 = vpack.c.bf16 %v2509, %v2509
    %2542 = vst [vmem:[#allocation2 + $0x4] sm:$0xf] %v2526
    %2543 = vst [vmem:[#allocation2 + $0xc] sm:$0xf] %v2527
    %2544 = vst [vmem:[#allocation2 + $0x14] sm:$0xf] %v2528
    %2545 = vst [vmem:[#allocation2 + $0x1c] sm:$0xf] %v2529
    %2546 = vst [vmem:[#allocation2 + $0x24] sm:$0xf] %v2530
    %2547 = vst [vmem:[#allocation2 + $0x2c] sm:$0xf] %v2531
    %2548 = vst [vmem:[#allocation2 + $0x34] sm:$0xf] %v2532
    %2549 = vst [vmem:[#allocation2 + $0x3c] sm:$0xf] %v2533
    %2550 = vst [vmem:[#allocation2 + $0x44] sm:$0xf] %v2534
    %2551 = vst [vmem:[#allocation2 + $0x4c] sm:$0xf] %v2535
    %2552 = vst [vmem:[#allocation2 + $0x54] sm:$0xf] %v2536
    %2553 = vst [vmem:[#allocation2 + $0x5c] sm:$0xf] %v2537
    %2554 = vst [vmem:[#allocation2 + $0x64] sm:$0xf] %v2538
    %2555 = vst [vmem:[#allocation2 + $0x6c] sm:$0xf] %v2539
    %2556 = vst [vmem:[#allocation2 + $0x74] sm:$0xf] %v2540
    %2557 = vst [vmem:[#allocation2 + $0x7c] sm:$0xf] %v2541
    %v2558 = vld [vmem:[#allocation2] sm:$0xff]
    %v2559 = vld [vmem:[#allocation2 + $0x8] sm:$0xff]
    %v2560 = vld [vmem:[#allocation2 + $0x10] sm:$0xff]
    %v2561 = vld [vmem:[#allocation2 + $0x18] sm:$0xff]
    %v2562 = vld [vmem:[#allocation2 + $0x20] sm:$0xff]
    %v2563 = vld [vmem:[#allocation2 + $0x28] sm:$0xff]
    %v2564 = vld [vmem:[#allocation2 + $0x30] sm:$0xff]
    %v2565 = vld [vmem:[#allocation2 + $0x38] sm:$0xff]
    %v2566 = vld [vmem:[#allocation2 + $0x40] sm:$0xff]
    %v2567 = vld [vmem:[#allocation2 + $0x48] sm:$0xff]
    %v2568 = vld [vmem:[#allocation2 + $0x50] sm:$0xff]
    %v2569 = vld [vmem:[#allocation2 + $0x58] sm:$0xff]
    %v2570 = vld [vmem:[#allocation2 + $0x60] sm:$0xff]
    %v2571 = vld [vmem:[#allocation2 + $0x68] sm:$0xff]
    %v2572 = vld [vmem:[#allocation2 + $0x70] sm:$0xff]
    %v2573 = vld [vmem:[#allocation2 + $0x78] sm:$0xff]
    %s2574 = scalar_lea.vmem [#allocation11], 256
    %v2575 = vld [vmem:[%s2574] sm:$0xf]
    %v2576 = vld [vmem:[%s2574 + $0x4] sm:$0xf]
    %v2577 = vld [vmem:[%s2574 + $0x8] sm:$0xf]
    %v2578 = vld [vmem:[%s2574 + $0xc] sm:$0xf]
    %v2579 = vld [vmem:[%s2574 + $0x10] sm:$0xf]
    %v2580 = vld [vmem:[%s2574 + $0x14] sm:$0xf]
    %v2581 = vld [vmem:[%s2574 + $0x18] sm:$0xf]
    %v2582 = vld [vmem:[%s2574 + $0x1c] sm:$0xf]
    %v2583 = vld [vmem:[%s2574 + $0x20] sm:$0xf]
    %v2584 = vld [vmem:[%s2574 + $0x24] sm:$0xf]
    %v2585 = vld [vmem:[%s2574 + $0x28] sm:$0xf]
    %v2586 = vld [vmem:[%s2574 + $0x2c] sm:$0xf]
    %v2587 = vld [vmem:[%s2574 + $0x30] sm:$0xf]
    %v2588 = vld [vmem:[%s2574 + $0x34] sm:$0xf]
    %v2589 = vld [vmem:[%s2574 + $0x38] sm:$0xf]
    %v2590 = vld [vmem:[%s2574 + $0x3c] sm:$0xf]
    %v2591 = vld [vmem:[%s2574 + $0x40] sm:$0xf]
    %v2592 = vld [vmem:[%s2574 + $0x44] sm:$0xf]
    %v2593 = vld [vmem:[%s2574 + $0x48] sm:$0xf]
    %v2594 = vld [vmem:[%s2574 + $0x4c] sm:$0xf]
    %v2595 = vld [vmem:[%s2574 + $0x50] sm:$0xf]
    %v2596 = vld [vmem:[%s2574 + $0x54] sm:$0xf]
    %v2597 = vld [vmem:[%s2574 + $0x58] sm:$0xf]
    %v2598 = vld [vmem:[%s2574 + $0x5c] sm:$0xf]
    %v2599 = vld [vmem:[%s2574 + $0x60] sm:$0xf]
    %v2600 = vld [vmem:[%s2574 + $0x64] sm:$0xf]
    %v2601 = vld [vmem:[%s2574 + $0x68] sm:$0xf]
    %v2602 = vld [vmem:[%s2574 + $0x6c] sm:$0xf]
    %v2603 = vld [vmem:[%s2574 + $0x70] sm:$0xf]
    %v2604 = vld [vmem:[%s2574 + $0x74] sm:$0xf]
    %v2605 = vld [vmem:[%s2574 + $0x78] sm:$0xf]
    %v2606 = vld [vmem:[%s2574 + $0x7c] sm:$0xf]
    %s2607 = scalar_lea.vmem %s9, 2
    %v2608 = vld [vmem:[%s2607] sm:$0x1]
    %v2610 = vperm.slane %v2608, 0
    %v2628 = vunpack.c.l.b16 %v2558
    %v2629 = vunpack.c.h.b16 %v2558
    %v2630 = vunpack.c.l.b16 %v2559
    %v2631 = vunpack.c.h.b16 %v2559
    %v2632 = vunpack.c.l.b16 %v2560
    %v2633 = vunpack.c.h.b16 %v2560
    %v2634 = vunpack.c.l.b16 %v2561
    %v2635 = vunpack.c.h.b16 %v2561
    %v2636 = vunpack.c.l.b16 %v2562
    %v2637 = vunpack.c.h.b16 %v2562
    %v2638 = vunpack.c.l.b16 %v2563
    %v2639 = vunpack.c.h.b16 %v2563
    %v2640 = vunpack.c.l.b16 %v2564
    %v2641 = vunpack.c.h.b16 %v2564
    %v2642 = vunpack.c.l.b16 %v2565
    %v2643 = vunpack.c.h.b16 %v2565
    %v2644 = vunpack.c.l.b16 %v2566
    %v2645 = vunpack.c.h.b16 %v2566
    %v2646 = vunpack.c.l.b16 %v2567
    %v2647 = vunpack.c.h.b16 %v2567
    %v2648 = vunpack.c.l.b16 %v2568
    %v2649 = vunpack.c.h.b16 %v2568
    %v2650 = vunpack.c.l.b16 %v2569
    %v2651 = vunpack.c.h.b16 %v2569
    %v2652 = vunpack.c.l.b16 %v2570
    %v2653 = vunpack.c.h.b16 %v2570
    %v2654 = vunpack.c.l.b16 %v2571
    %v2655 = vunpack.c.h.b16 %v2571
    %v2656 = vunpack.c.l.b16 %v2572
    %v2657 = vunpack.c.h.b16 %v2572
    %v2658 = vunpack.c.l.b16 %v2573
    %v2659 = vunpack.c.h.b16 %v2573
    %v2660 = vpack.c.b16 %v2630, %v2628
    %v2661 = vpack.c.b16 %v2631, %v2629
    %v2662 = vpack.c.b16 %v2634, %v2632
    %v2663 = vpack.c.b16 %v2635, %v2633
    %v2664 = vpack.c.b16 %v2638, %v2636
    %v2665 = vpack.c.b16 %v2639, %v2637
    %v2666 = vpack.c.b16 %v2642, %v2640
    %v2667 = vpack.c.b16 %v2643, %v2641
    %v2668 = vpack.c.b16 %v2646, %v2644
    %v2669 = vpack.c.b16 %v2647, %v2645
    %v2670 = vpack.c.b16 %v2650, %v2648
    %v2671 = vpack.c.b16 %v2651, %v2649
    %v2672 = vpack.c.b16 %v2654, %v2652
    %v2673 = vpack.c.b16 %v2655, %v2653
    %v2674 = vpack.c.b16 %v2658, %v2656
    %v2675 = vpack.c.b16 %v2659, %v2657
    %v2724 = vunpack.c.l.b16 %v2575
    %v2725 = vunpack.c.l.b16 %v2576
    %v2726 = vunpack.c.l.b16 %v2577
    %v2727 = vunpack.c.l.b16 %v2578
    %v2728 = vunpack.c.l.b16 %v2579
    %v2729 = vunpack.c.l.b16 %v2580
    %v2730 = vunpack.c.l.b16 %v2581
    %v2731 = vunpack.c.l.b16 %v2582
    %v2732 = vunpack.c.l.b16 %v2583
    %v2733 = vunpack.c.l.b16 %v2584
    %v2734 = vunpack.c.l.b16 %v2585
    %v2735 = vunpack.c.l.b16 %v2586
    %v2736 = vunpack.c.l.b16 %v2587
    %v2737 = vunpack.c.l.b16 %v2588
    %v2738 = vunpack.c.l.b16 %v2589
    %v2739 = vunpack.c.l.b16 %v2590
    %v2740 = vunpack.c.l.b16 %v2591
    %v2741 = vunpack.c.l.b16 %v2592
    %v2742 = vunpack.c.l.b16 %v2593
    %v2743 = vunpack.c.l.b16 %v2594
    %v2744 = vunpack.c.l.b16 %v2595
    %v2745 = vunpack.c.l.b16 %v2596
    %v2746 = vunpack.c.l.b16 %v2597
    %v2747 = vunpack.c.l.b16 %v2598
    %v2748 = vunpack.c.l.b16 %v2599
    %v2749 = vunpack.c.l.b16 %v2600
    %v2750 = vunpack.c.l.b16 %v2601
    %v2751 = vunpack.c.l.b16 %v2602
    %v2752 = vunpack.c.l.b16 %v2603
    %v2753 = vunpack.c.l.b16 %v2604
    %v2754 = vunpack.c.l.b16 %v2605
    %v2755 = vunpack.c.l.b16 %v2606
    %v2756 = vpack.c.b16 %v2725, %v2724
    %v2757 = vpack.c.b16 %v2727, %v2726
    %v2758 = vpack.c.b16 %v2729, %v2728
    %v2759 = vpack.c.b16 %v2731, %v2730
    %v2760 = vpack.c.b16 %v2733, %v2732
    %v2761 = vpack.c.b16 %v2735, %v2734
    %v2762 = vpack.c.b16 %v2737, %v2736
    %v2763 = vpack.c.b16 %v2739, %v2738
    %v2764 = vpack.c.b16 %v2741, %v2740
    %v2765 = vpack.c.b16 %v2743, %v2742
    %v2766 = vpack.c.b16 %v2745, %v2744
    %v2767 = vpack.c.b16 %v2747, %v2746
    %v2768 = vpack.c.b16 %v2749, %v2748
    %v2769 = vpack.c.b16 %v2751, %v2750
    %v2770 = vpack.c.b16 %v2753, %v2752
    %v2771 = vpack.c.b16 %v2755, %v2754
    %2788 = vmatpush.bf16.msra.mxu0 %v2763
    %2789 = vmatpush.bf16.msra.mxu0 %v2762
    %2790 = vmatpush.bf16.msra.mxu0 %v2761
    %2791 = vmatpush.bf16.msra.mxu0 %v2760
    %2792 = vmatpush.bf16.msra.mxu0 %v2759
    %2793 = vmatpush.bf16.msra.mxu0 %v2758
    %2794 = vmatpush.bf16.msra.mxu0 %v2757
    %2795 = vmatpush.bf16.msra.mxu0 %v2756
    %2796 = vmatmul.bf16.gmra.mxu0 %v2660
    %v2797 = vpop.f32.mrf.mxu0
    %v2798 = vadd.f32 %v2610, %v2797
    %v2799 = vpop.f32.mrf.mxu0
    %v2800 = vadd.f32 %v2610, %v2799
    %2801 = vmatmul.bf16.gmra.mxu0 %v2662
    %v2802 = vpop.f32.mrf.mxu0
    %v2803 = vadd.f32 %v2610, %v2802
    %v2804 = vpop.f32.mrf.mxu0
    %v2805 = vadd.f32 %v2610, %v2804
    %2806 = vmatmul.bf16.gmra.mxu0 %v2664
    %v2807 = vpop.f32.mrf.mxu0
    %v2808 = vadd.f32 %v2610, %v2807
    %v2809 = vpop.f32.mrf.mxu0
    %v2810 = vadd.f32 %v2610, %v2809
    %2811 = vmatmul.bf16.gmra.mxu0 %v2666
    %v2812 = vpop.f32.mrf.mxu0
    %v2813 = vadd.f32 %v2610, %v2812
    %v2814 = vpop.f32.mrf.mxu0
    %v2815 = vadd.f32 %v2610, %v2814
    %2816 = vmatmul.bf16.gmra.mxu0 %v2668
    %v2817 = vpop.f32.mrf.mxu0
    %v2818 = vadd.f32 %v2610, %v2817
    %v2819 = vpop.f32.mrf.mxu0
    %v2820 = vadd.f32 %v2610, %v2819
    %2821 = vmatmul.bf16.gmra.mxu0 %v2670
    %v2822 = vpop.f32.mrf.mxu0
    %v2823 = vadd.f32 %v2610, %v2822
    %v2824 = vpop.f32.mrf.mxu0
    %v2825 = vadd.f32 %v2610, %v2824
    %2826 = vmatmul.bf16.gmra.mxu0 %v2672
    %v2827 = vpop.f32.mrf.mxu0
    %v2828 = vadd.f32 %v2610, %v2827
    %v2829 = vpop.f32.mrf.mxu0
    %v2830 = vadd.f32 %v2610, %v2829
    %2831 = vmatmul.bf16.gmra.mxu0 %v2674
    %v2832 = vpop.f32.mrf.mxu0
    %v2833 = vadd.f32 %v2610, %v2832
    %v2834 = vpop.f32.mrf.mxu0
    %v2835 = vadd.f32 %v2610, %v2834
    %2836 = vdwg.mxu0
    %2837 = vmatpush.bf16.msra.mxu0 %v2771
    %2838 = vmatpush.bf16.msra.mxu0 %v2770
    %2839 = vmatpush.bf16.msra.mxu0 %v2769
    %2840 = vmatpush.bf16.msra.mxu0 %v2768
    %2841 = vmatpush.bf16.msra.mxu0 %v2767
    %2842 = vmatpush.bf16.msra.mxu0 %v2766
    %2843 = vmatpush.bf16.msra.mxu0 %v2765
    %2844 = vmatpush.bf16.msra.mxu0 %v2764
    %2845 = vmatmul.bf16.gmra.mxu0 %v2661
    %v2846 = vpop.f32.mrf.mxu0
    %v2847 = vadd.f32 %v2798, %v2846
    %v2848 = vpop.f32.mrf.mxu0
    %v2849 = vadd.f32 %v2800, %v2848
    %2850 = vmatmul.bf16.gmra.mxu0 %v2663
    %v2851 = vpop.f32.mrf.mxu0
    %v2852 = vadd.f32 %v2803, %v2851
    %v2853 = vpop.f32.mrf.mxu0
    %v2854 = vadd.f32 %v2805, %v2853
    %2855 = vmatmul.bf16.gmra.mxu0 %v2665
    %v2856 = vpop.f32.mrf.mxu0
    %v2857 = vadd.f32 %v2808, %v2856
    %v2858 = vpop.f32.mrf.mxu0
    %v2859 = vadd.f32 %v2810, %v2858
    %2860 = vmatmul.bf16.gmra.mxu0 %v2667
    %v2861 = vpop.f32.mrf.mxu0
    %v2862 = vadd.f32 %v2813, %v2861
    %v2863 = vpop.f32.mrf.mxu0
    %v2864 = vadd.f32 %v2815, %v2863
    %2865 = vmatmul.bf16.gmra.mxu0 %v2669
    %v2866 = vpop.f32.mrf.mxu0
    %v2867 = vadd.f32 %v2818, %v2866
    %v2868 = vpop.f32.mrf.mxu0
    %v2869 = vadd.f32 %v2820, %v2868
    %2870 = vmatmul.bf16.gmra.mxu0 %v2671
    %v2871 = vpop.f32.mrf.mxu0
    %v2872 = vadd.f32 %v2823, %v2871
    %v2873 = vpop.f32.mrf.mxu0
    %v2874 = vadd.f32 %v2825, %v2873
    %2875 = vmatmul.bf16.gmra.mxu0 %v2673
    %v2876 = vpop.f32.mrf.mxu0
    %v2877 = vadd.f32 %v2828, %v2876
    %v2878 = vpop.f32.mrf.mxu0
    %v2879 = vadd.f32 %v2830, %v2878
    %2880 = vmatmul.bf16.gmra.mxu0 %v2675
    %v2881 = vpop.f32.mrf.mxu0
    %v2882 = vadd.f32 %v2833, %v2881
    %v2883 = vpop.f32.mrf.mxu0
    %v2884 = vadd.f32 %v2835, %v2883
    %2885 = vdwg.mxu0
    %v2886 = vmax.f32 %v2847, 0.0
    %v2887 = vmax.f32 %v2849, 0.0
    %v2888 = vmax.f32 %v2852, 0.0
    %v2889 = vmax.f32 %v2854, 0.0
    %v2890 = vmax.f32 %v2857, 0.0
    %v2891 = vmax.f32 %v2859, 0.0
    %v2892 = vmax.f32 %v2862, 0.0
    %v2893 = vmax.f32 %v2864, 0.0
    %v2894 = vmax.f32 %v2867, 0.0
    %v2895 = vmax.f32 %v2869, 0.0
    %v2896 = vmax.f32 %v2872, 0.0
    %v2897 = vmax.f32 %v2874, 0.0
    %v2898 = vmax.f32 %v2877, 0.0
    %v2899 = vmax.f32 %v2879, 0.0
    %v2900 = vmax.f32 %v2882, 0.0
    %v2901 = vmax.f32 %v2884, 0.0
    %2902 = vst [vmem:[#allocation12] sm:$0xff] %v2886
    %2903 = vst [vmem:[#allocation12 + $0x8] sm:$0xff] %v2887
    %2904 = vst [vmem:[#allocation12 + $0x10] sm:$0xff] %v2888
    %2905 = vst [vmem:[#allocation12 + $0x18] sm:$0xff] %v2889
    %2906 = vst [vmem:[#allocation12 + $0x20] sm:$0xff] %v2890
    %2907 = vst [vmem:[#allocation12 + $0x28] sm:$0xff] %v2891
    %2908 = vst [vmem:[#allocation12 + $0x30] sm:$0xff] %v2892
    %2909 = vst [vmem:[#allocation12 + $0x38] sm:$0xff] %v2893
    %2910 = vst [vmem:[#allocation12 + $0x40] sm:$0xff] %v2894
    %2911 = vst [vmem:[#allocation12 + $0x48] sm:$0xff] %v2895
    %2912 = vst [vmem:[#allocation12 + $0x50] sm:$0xff] %v2896
    %2913 = vst [vmem:[#allocation12 + $0x58] sm:$0xff] %v2897
    %2914 = vst [vmem:[#allocation12 + $0x60] sm:$0xff] %v2898
    %2915 = vst [vmem:[#allocation12 + $0x68] sm:$0xff] %v2899
    %2916 = vst [vmem:[#allocation12 + $0x70] sm:$0xff] %v2900
    %2917 = vst [vmem:[#allocation12 + $0x78] sm:$0xff] %v2901
    // Predicated region
    $region62: #{tpu_custom_call.1} parent=1 // pred_check
      _
    $region63: #{tpu_custom_call.1} parent=1 // pred_check_branch
      %2919 = sbr.rel (0) target = $region65
    $region64: #{tpu_custom_call.1} parent=1 // pred_region
      %2921 = vsyncadd [#allocation5], 0
      %s2922 = sshll.u32 [#allocation12], 4
      %s2923 = int_to_ptr.vmem [resolvable:$true] %s2922
      %s2924 = sshll.u32 %s10, 4
      %s2925 = int_to_ptr.hbm [resolvable:$true] %s2924
      %2930 = dma.vmem_to_hbm [thread:$0]  %s2923, 2048, %s2925, [#allocation5], 128, 128, 8
    $region65: #{tpu_custom_call.1} parent=1 // pred_fallthru
      _
    // Predicated region
    $region66: #{tpu_custom_call.1} parent=1 // pred_check
      _
    $region67: #{tpu_custom_call.1} parent=1 // pred_check_branch
      %2932 = sbr.rel (0) target = $region69
    $region68: #{tpu_custom_call.1} parent=1 // pred_region
      %2934 = dma.done [#allocation5], 2048
    $region69: #{tpu_custom_call.1} parent=1 // pred_fallthru
      _
    %2935 = vsyncpa [#allocation4], 1
    %2936 = vsyncpa [#allocation7], 1
    %2937 = vsyncpa [#allocation10], 1
    %2938 = vsyncpa [#allocation5], 1

</llo_original>
